<compile_context>
chip_gen: v7x
topology: tpu7x:2x2x1
jax: 0.10.0
libtpu: 0.0.40
codegen_flags: <defaults>
</compile_context>

<pallas_src>
import functools

import jax
import jax.numpy as jnp
from jax.experimental import pallas as pl
from jax.experimental.pallas import tpu as pltpu

_BN_EPS = 1e-5


def _round_up(n, m):
    return ((n + m - 1) // m) * m


# ---------------- fused MLP kernel ------------------------------------------------


def _make_mlp_kernel(activation):
    if activation == "relu":
        act = lambda z: jnp.maximum(z, 0.0)
    elif activation == "tanh":
        act = jnp.tanh
    else:
        raise ValueError("Unknown Activation Function")

    def kernel(x_ref,
               w1_ref, b1_ref, s1_ref, t1_ref,
               w2_ref, b2_ref, s2_ref, t2_ref,
               w3_ref, b3_ref, s3_ref, t3_ref,
               w4_ref, b4_ref,
               o_ref):
        # layer1 -> act -> BN1 (BN folded to per-feature scale/shift, eval mode)
        h = jnp.dot(x_ref[...], w1_ref[...], preferred_element_type=jnp.float32)
        h = act(h + b1_ref[...]) * s1_ref[...] + t1_ref[...]
        # layer2 -> act -> dropout(id) -> BN2
        h = jnp.dot(h.astype(jnp.bfloat16), w2_ref[...],
                    preferred_element_type=jnp.float32)
        h = act(h + b2_ref[...]) * s2_ref[...] + t2_ref[...]
        # layer3 -> act -> dropout(id) -> BN3
        h = jnp.dot(h.astype(jnp.bfloat16), w3_ref[...],
                    preferred_element_type=jnp.float32)
        h = act(h + b3_ref[...]) * s3_ref[...] + t3_ref[...]
        # layer4 -> log-softmax. Padded class columns have zero weights and a
        # -1e30 bias, so exp(...)==0 and the real-class normalization is exact.
        logits = jnp.dot(h.astype(jnp.bfloat16), w4_ref[...],
                         preferred_element_type=jnp.float32) + b4_ref[...]
        m = jnp.max(logits, axis=-1, keepdims=True)
        s = logits - m
        lse = jnp.log(jnp.sum(jnp.exp(s), axis=-1, keepdims=True))
        o_ref[...] = s - lse

    return kernel


# ---------------- host wrapper -----------------------------------------------------


def digit_recognizer_mlp_forward(x, params, activation="relu", block_m=256):
    """x: [B, C, H, W] float32 with C*H*W == 784. Returns [B, num_classes] log-probs."""
    (w1, b1, g1, be1, rm1, rv1,
     w2, b2, g2, be2, rm2, rv2,
     w3, b3, g3, be3, rm3, rv3,
     w4, b4) = params

    B = x.shape[0]
    x2d = x.reshape(B, -1).astype(jnp.float32)
    K = x2d.shape[1]

    def bn_fold(gamma, beta, mean, var):
        scale = gamma * jax.lax.rsqrt(var.astype(jnp.float32) + _BN_EPS)
        shift = beta - mean * scale
        return (scale.reshape(1, -1).astype(jnp.float32),
                shift.reshape(1, -1).astype(jnp.float32))

    s1, t1 = bn_fold(g1, be1, rm1, rv1)
    s2, t2 = bn_fold(g2, be2, rm2, rv2)
    s3, t3 = bn_fold(g3, be3, rm3, rv3)

    # Weights -> [in, out] bf16 so the output-feature axis rides the 128-lane dim.
    w1t = w1.T.astype(jnp.bfloat16)
    w2t = w2.T.astype(jnp.bfloat16)
    w3t = w3.T.astype(jnp.bfloat16)

    num_classes = w4.shape[0]
    n_pad = _round_up(max(num_classes, 128), 128)  # lane-dense final output
    w4t = jnp.zeros((w4.shape[1], n_pad), jnp.bfloat16)
    w4t = w4t.at[:, :num_classes].set(w4.T.astype(jnp.bfloat16))
    b4p = jnp.full((1, n_pad), -1e30, jnp.float32)
    b4p = b4p.at[0, :num_classes].set(b4.astype(jnp.float32))

    b1r = b1.reshape(1, -1).astype(jnp.float32)
    b2r = b2.reshape(1, -1).astype(jnp.float32)
    b3r = b3.reshape(1, -1).astype(jnp.float32)

    # Batch tiling: grid over M keeps VMEM bounded at any batch size and lets
    # the auto-pipeline double-buffer the x / out tiles.
    tm = block_m if B >= block_m else _round_up(B, 8)
    m_pad = _round_up(B, tm)
    x_p = jnp.zeros((m_pad, K), jnp.bfloat16).at[:B, :].set(x2d.astype(jnp.bfloat16))

    d1, d2, d3, d4 = w1t.shape[1], w2t.shape[1], w3t.shape[1], n_pad

    def full(shape):
        return pl.BlockSpec(shape, lambda i: (0, 0))

    out = pl.pallas_call(
        _make_mlp_kernel(activation),
        out_shape=jax.ShapeDtypeStruct((m_pad, d4), jnp.float32),
        grid=(m_pad // tm,),
        in_specs=[
            pl.BlockSpec((tm, K), lambda i: (i, 0)),
            full((K, d1)), full((1, d1)), full((1, d1)), full((1, d1)),
            full((d1, d2)), full((1, d2)), full((1, d2)), full((1, d2)),
            full((d2, d3)), full((1, d3)), full((1, d3)), full((1, d3)),
            full((d3, d4)), full((1, d4)),
        ],
        out_specs=pl.BlockSpec((tm, d4), lambda i: (i, 0)),
        compiler_params=pltpu.CompilerParams(
            dimension_semantics=("parallel",)),
    )(x_p,
      w1t, b1r, s1, t1,
      w2t, b2r, s2, t2,
      w3t, b3r, s3, t3,
      w4t, b4p)

    return out[:B, :num_classes]


# ---------------- parameter init + pure-JAX reference ------------------------------


def init_params(key, dim=28, num_classes=10):
    ks = jax.random.split(key, 14)

    def lin(kw, kb, fan_in, fan_out, scale):
        w = jax.random.normal(kw, (fan_out, fan_in), jnp.float32) * scale
        b = jax.random.normal(kb, (fan_out,), jnp.float32) * scale
        return w, b

    def bn(kg, kb, n):
        gamma = 1.0 + 0.1 * jax.random.normal(kg, (n,), jnp.float32)
        beta = 0.1 * jax.random.normal(kb, (n,), jnp.float32)
        mean = 0.05 * jax.random.normal(jax.random.fold_in(kg, 1), (n,), jnp.float32)
        var = 1.0 + 0.1 * jnp.abs(
            jax.random.normal(jax.random.fold_in(kb, 1), (n,), jnp.float32))
        return gamma, beta, mean, var

    w1, b1 = lin(ks[0], ks[1], dim * dim, 512, 0.03)
    w2, b2 = lin(ks[2], ks[3], 512, 256, 0.04)
    w3, b3 = lin(ks[4], ks[5], 256, 128, 0.06)
    w4, b4 = lin(ks[6], ks[7], 128, num_classes, 0.08)
    g1, be1, rm1, rv1 = bn(ks[8], ks[9], 512)
    g2, be2, rm2, rv2 = bn(ks[10], ks[11], 256)
    g3, be3, rm3, rv3 = bn(ks[12], ks[13], 128)
    return (w1, b1, g1, be1, rm1, rv1,
            w2, b2, g2, be2, rm2, rv2,
            w3, b3, g3, be3, rm3, rv3,
            w4, b4)


def reference_forward(x, params, activation="relu"):
    act = (lambda z: jnp.maximum(z, 0.0)) if activation == "relu" else jnp.tanh
    (w1, b1, g1, be1, rm1, rv1,
     w2, b2, g2, be2, rm2, rv2,
     w3, b3, g3, be3, rm3, rv3,
     w4, b4) = params
    B = x.shape[0]
    h = x.reshape(B, -1)

    def bn(h, g, be, rm, rv):
        return (h - rm) / jnp.sqrt(rv + _BN_EPS) * g + be

    h = bn(act(h @ w1.T + b1), g1, be1, rm1, rv1)
    h = bn(act(h @ w2.T + b2), g2, be2, rm2, rv2)
    h = bn(act(h @ w3.T + b3), g3, be3, rm3, rv3)
    logits = h @ w4.T + b4
    return jax.nn.log_softmax(logits, axis=1)


# TODO(synk): eval-mode semantics only — nn.Dropout(0.1) is identity and BatchNorm1d
# uses folded running statistics; training-mode batch stats / dropout are not implemented.

if __name__ == "__main__":
    key = jax.random.PRNGKey(0)
    kx, kp = jax.random.split(key)
    x = jax.random.normal(kx, (2, 1, 28, 28), jnp.float32)  # batch=2, 1x28x28
    params = init_params(kp)

    fwd = jax.jit(functools.partial(digit_recognizer_mlp_forward, activation="relu"))
    out = jax.block_until_ready(fwd(x, params))

    assert out.shape == (2, 10)
    # log-softmax rows must sum (in prob space) to ~1
    assert jnp.allclose(jnp.sum(jnp.exp(out), axis=1), 1.0, atol=1e-4)
    # match the pure-JAX (f32) reference within bf16-matmul tolerance
    ref = reference_forward(x, params, activation="relu")
    assert jnp.allclose(out, ref, atol=1e-1), float(jnp.max(jnp.abs(out - ref)))
    print("KERNEL_OK")
</pallas_src>

<mosaic_0001>
module attributes {stable_mosaic.version = 11 : i64} {
  func.func @kernel(%arg0: i32, %arg1: memref<8x784xbf16, #tpu.memory_space<vmem>>, %arg2: memref<784x512xbf16, #tpu.memory_space<vmem>>, %arg3: memref<1x512xf32, #tpu.memory_space<vmem>>, %arg4: memref<1x512xf32, #tpu.memory_space<vmem>>, %arg5: memref<1x512xf32, #tpu.memory_space<vmem>>, %arg6: memref<512x256xbf16, #tpu.memory_space<vmem>>, %arg7: memref<1x256xf32, #tpu.memory_space<vmem>>, %arg8: memref<1x256xf32, #tpu.memory_space<vmem>>, %arg9: memref<1x256xf32, #tpu.memory_space<vmem>>, %arg10: memref<256x128xbf16, #tpu.memory_space<vmem>>, %arg11: memref<1x128xf32, #tpu.memory_space<vmem>>, %arg12: memref<1x128xf32, #tpu.memory_space<vmem>>, %arg13: memref<1x128xf32, #tpu.memory_space<vmem>>, %arg14: memref<128x128xbf16, #tpu.memory_space<vmem>>, %arg15: memref<1x128xf32, #tpu.memory_space<vmem>>, %arg16: memref<8x128xf32, #tpu.memory_space<vmem>>) attributes {dimension_semantics = [#tpu.dimension_semantics<parallel>], iteration_bounds = array<i64: 1>, scalar_prefetch = 0 : i64, scratch_operands = 0 : i64, tpu.core_type = #tpu.core_type<tc>, window_params = [{transform_indices = @transform_0, window_bounds = array<i64: 8, 784>}, {pipeline_mode = #tpu.pipeline_mode<synchronous>, transform_indices = @transform_1, window_bounds = array<i64: 784, 512>}, {pipeline_mode = #tpu.pipeline_mode<synchronous>, transform_indices = @transform_2, window_bounds = array<i64: 1, 512>}, {pipeline_mode = #tpu.pipeline_mode<synchronous>, transform_indices = @transform_3, window_bounds = array<i64: 1, 512>}, {pipeline_mode = #tpu.pipeline_mode<synchronous>, transform_indices = @transform_4, window_bounds = array<i64: 1, 512>}, {pipeline_mode = #tpu.pipeline_mode<synchronous>, transform_indices = @transform_5, window_bounds = array<i64: 512, 256>}, {pipeline_mode = #tpu.pipeline_mode<synchronous>, transform_indices = @transform_6, window_bounds = array<i64: 1, 256>}, {pipeline_mode = #tpu.pipeline_mode<synchronous>, transform_indices = @transform_7, window_bounds = array<i64: 1, 256>}, {pipeline_mode = #tpu.pipeline_mode<synchronous>, transform_indices = @transform_8, window_bounds = array<i64: 1, 256>}, {pipeline_mode = #tpu.pipeline_mode<synchronous>, transform_indices = @transform_9, window_bounds = array<i64: 256, 128>}, {pipeline_mode = #tpu.pipeline_mode<synchronous>, transform_indices = @transform_10, window_bounds = array<i64: 1, 128>}, {pipeline_mode = #tpu.pipeline_mode<synchronous>, transform_indices = @transform_11, window_bounds = array<i64: 1, 128>}, {pipeline_mode = #tpu.pipeline_mode<synchronous>, transform_indices = @transform_12, window_bounds = array<i64: 1, 128>}, {pipeline_mode = #tpu.pipeline_mode<synchronous>, transform_indices = @transform_13, window_bounds = array<i64: 128, 128>}, {pipeline_mode = #tpu.pipeline_mode<synchronous>, transform_indices = @transform_14, window_bounds = array<i64: 1, 128>}, {transform_indices = @transform_15, window_bounds = array<i64: 8, 128>}]} {
    %c0 = arith.constant 0 : index
    %c0_0 = arith.constant 0 : index
    %0 = vector.load %arg1[%c0, %c0_0] : memref<8x784xbf16, #tpu.memory_space<vmem>>, vector<8x784xbf16>
    %c0_1 = arith.constant 0 : index
    %c0_2 = arith.constant 0 : index
    %1 = vector.load %arg2[%c0_1, %c0_2] : memref<784x512xbf16, #tpu.memory_space<vmem>>, vector<784x512xbf16>
    %cst = arith.constant dense<0.000000e+00> : vector<8x512xf32>
    %2 = tpu.matmul %0, %1, %cst {dimension_numbers = #tpu.dot_dimension_numbers<[1], [0], [0], [1], [0, 0, 1, 1], [], []>} : vector<8x784xbf16>, vector<784x512xbf16>, vector<8x512xf32> -> vector<8x512xf32>
    %c0_3 = arith.constant 0 : index
    %c0_4 = arith.constant 0 : index
    %3 = vector.load %arg3[%c0_3, %c0_4] : memref<1x512xf32, #tpu.memory_space<vmem>>, vector<1x512xf32>
    %4 = vector.broadcast %3 : vector<1x512xf32> to vector<8x512xf32>
    %5 = arith.addf %2, %4 : vector<8x512xf32>
    %cst_5 = arith.constant 0.000000e+00 : f32
    %6 = vector.broadcast %cst_5 : f32 to vector<8x512xf32>
    %7 = arith.maximumf %5, %6 : vector<8x512xf32>
    %c0_6 = arith.constant 0 : index
    %c0_7 = arith.constant 0 : index
    %8 = vector.load %arg4[%c0_6, %c0_7] : memref<1x512xf32, #tpu.memory_space<vmem>>, vector<1x512xf32>
    %9 = vector.broadcast %8 : vector<1x512xf32> to vector<8x512xf32>
    %10 = arith.mulf %7, %9 : vector<8x512xf32>
    %c0_8 = arith.constant 0 : index
    %c0_9 = arith.constant 0 : index
    %11 = vector.load %arg5[%c0_8, %c0_9] : memref<1x512xf32, #tpu.memory_space<vmem>>, vector<1x512xf32>
    %12 = vector.broadcast %11 : vector<1x512xf32> to vector<8x512xf32>
    %13 = arith.addf %10, %12 : vector<8x512xf32>
    %14 = arith.truncf %13 : vector<8x512xf32> to vector<8x512xbf16>
    %c0_10 = arith.constant 0 : index
    %c0_11 = arith.constant 0 : index
    %15 = vector.load %arg6[%c0_10, %c0_11] : memref<512x256xbf16, #tpu.memory_space<vmem>>, vector<512x256xbf16>
    %cst_12 = arith.constant dense<0.000000e+00> : vector<8x256xf32>
    %16 = tpu.matmul %14, %15, %cst_12 {dimension_numbers = #tpu.dot_dimension_numbers<[1], [0], [0], [1], [0, 0, 1, 1], [], []>} : vector<8x512xbf16>, vector<512x256xbf16>, vector<8x256xf32> -> vector<8x256xf32>
    %c0_13 = arith.constant 0 : index
    %c0_14 = arith.constant 0 : index
    %17 = vector.load %arg7[%c0_13, %c0_14] : memref<1x256xf32, #tpu.memory_space<vmem>>, vector<1x256xf32>
    %18 = vector.broadcast %17 : vector<1x256xf32> to vector<8x256xf32>
    %19 = arith.addf %16, %18 : vector<8x256xf32>
    %cst_15 = arith.constant 0.000000e+00 : f32
    %20 = vector.broadcast %cst_15 : f32 to vector<8x256xf32>
    %21 = arith.maximumf %19, %20 : vector<8x256xf32>
    %c0_16 = arith.constant 0 : index
    %c0_17 = arith.constant 0 : index
    %22 = vector.load %arg8[%c0_16, %c0_17] : memref<1x256xf32, #tpu.memory_space<vmem>>, vector<1x256xf32>
    %23 = vector.broadcast %22 : vector<1x256xf32> to vector<8x256xf32>
    %24 = arith.mulf %21, %23 : vector<8x256xf32>
    %c0_18 = arith.constant 0 : index
    %c0_19 = arith.constant 0 : index
    %25 = vector.load %arg9[%c0_18, %c0_19] : memref<1x256xf32, #tpu.memory_space<vmem>>, vector<1x256xf32>
    %26 = vector.broadcast %25 : vector<1x256xf32> to vector<8x256xf32>
    %27 = arith.addf %24, %26 : vector<8x256xf32>
    %28 = arith.truncf %27 : vector<8x256xf32> to vector<8x256xbf16>
    %c0_20 = arith.constant 0 : index
    %c0_21 = arith.constant 0 : index
    %29 = vector.load %arg10[%c0_20, %c0_21] : memref<256x128xbf16, #tpu.memory_space<vmem>>, vector<256x128xbf16>
    %cst_22 = arith.constant dense<0.000000e+00> : vector<8x128xf32>
    %30 = tpu.matmul %28, %29, %cst_22 {dimension_numbers = #tpu.dot_dimension_numbers<[1], [0], [0], [1], [0, 0, 1, 1], [], []>} : vector<8x256xbf16>, vector<256x128xbf16>, vector<8x128xf32> -> vector<8x128xf32>
    %c0_23 = arith.constant 0 : index
    %c0_24 = arith.constant 0 : index
    %31 = vector.load %arg11[%c0_23, %c0_24] : memref<1x128xf32, #tpu.memory_space<vmem>>, vector<1x128xf32>
    %32 = vector.broadcast %31 : vector<1x128xf32> to vector<8x128xf32>
    %33 = arith.addf %30, %32 : vector<8x128xf32>
    %cst_25 = arith.constant 0.000000e+00 : f32
    %34 = vector.broadcast %cst_25 : f32 to vector<8x128xf32>
    %35 = arith.maximumf %33, %34 : vector<8x128xf32>
    %c0_26 = arith.constant 0 : index
    %c0_27 = arith.constant 0 : index
    %36 = vector.load %arg12[%c0_26, %c0_27] : memref<1x128xf32, #tpu.memory_space<vmem>>, vector<1x128xf32>
    %37 = vector.broadcast %36 : vector<1x128xf32> to vector<8x128xf32>
    %38 = arith.mulf %35, %37 : vector<8x128xf32>
    %c0_28 = arith.constant 0 : index
    %c0_29 = arith.constant 0 : index
    %39 = vector.load %arg13[%c0_28, %c0_29] : memref<1x128xf32, #tpu.memory_space<vmem>>, vector<1x128xf32>
    %40 = vector.broadcast %39 : vector<1x128xf32> to vector<8x128xf32>
    %41 = arith.addf %38, %40 : vector<8x128xf32>
    %42 = arith.truncf %41 : vector<8x128xf32> to vector<8x128xbf16>
    %c0_30 = arith.constant 0 : index
    %c0_31 = arith.constant 0 : index
    %43 = vector.load %arg14[%c0_30, %c0_31] : memref<128x128xbf16, #tpu.memory_space<vmem>>, vector<128x128xbf16>
    %cst_32 = arith.constant dense<0.000000e+00> : vector<8x128xf32>
    %44 = tpu.matmul %42, %43, %cst_32 {dimension_numbers = #tpu.dot_dimension_numbers<[1], [0], [0], [1], [0, 0, 1, 1], [], []>} : vector<8x128xbf16>, vector<128x128xbf16>, vector<8x128xf32> -> vector<8x128xf32>
    %c0_33 = arith.constant 0 : index
    %c0_34 = arith.constant 0 : index
    %45 = vector.load %arg15[%c0_33, %c0_34] : memref<1x128xf32, #tpu.memory_space<vmem>>, vector<1x128xf32>
    %46 = vector.broadcast %45 : vector<1x128xf32> to vector<8x128xf32>
    %47 = arith.addf %44, %46 : vector<8x128xf32>
    %cst_35 = arith.constant dense<0xFF800000> : vector<8xf32>
    %48 = vector.multi_reduction <maximumf>, %47, %cst_35 [1] : vector<8x128xf32> to vector<8xf32>
    %49 = vector.shape_cast %48 : vector<8xf32> to vector<8x1xf32>
    %50 = vector.broadcast %49 : vector<8x1xf32> to vector<8x128xf32>
    %51 = arith.subf %47, %50 : vector<8x128xf32>
    %52 = math.exp %51 : vector<8x128xf32>
    %cst_36 = arith.constant dense<0.000000e+00> : vector<8xf32>
    %53 = vector.multi_reduction <add>, %52, %cst_36 [1] : vector<8x128xf32> to vector<8xf32>
    %54 = vector.shape_cast %53 : vector<8xf32> to vector<8x1xf32>
    %55 = math.log %54 : vector<8x1xf32>
    %56 = vector.broadcast %55 : vector<8x1xf32> to vector<8x128xf32>
    %57 = arith.subf %51, %56 : vector<8x128xf32>
    %c0_37 = arith.constant 0 : index
    %c0_38 = arith.constant 0 : index
    %58 = vector.load %arg16[%c0_37, %c0_38] : memref<8x128xf32, #tpu.memory_space<vmem>>, vector<8x128xf32>
    tpu.vector_store %arg16[%c0_37, %c0_38], %57 {strides = array<i32>} : memref<8x128xf32, #tpu.memory_space<vmem>>, vector<8x128xf32>,
    return
  }
  func.func @transform_0(%arg0: i32) -> (i32, i32) {
    %c0_i32 = arith.constant 0 : i32
    %c0_i32_0 = arith.constant 0 : i32
    return %arg0, %c0_i32 : i32, i32
  }
  func.func @transform_1(%arg0: i32) -> (i32, i32) {
    %c0_i32 = arith.constant 0 : i32
    %c0_i32_0 = arith.constant 0 : i32
    %c0_i32_1 = arith.constant 0 : i32
    return %c0_i32, %c0_i32_0 : i32, i32
  }
  func.func @transform_2(%arg0: i32) -> (i32, i32) {
    %c0_i32 = arith.constant 0 : i32
    %c0_i32_0 = arith.constant 0 : i32
    %c0_i32_1 = arith.constant 0 : i32
    return %c0_i32, %c0_i32_0 : i32, i32
  }
  func.func @transform_3(%arg0: i32) -> (i32, i32) {
    %c0_i32 = arith.constant 0 : i32
    %c0_i32_0 = arith.constant 0 : i32
    %c0_i32_1 = arith.constant 0 : i32
    return %c0_i32, %c0_i32_0 : i32, i32
  }
  func.func @transform_4(%arg0: i32) -> (i32, i32) {
    %c0_i32 = arith.constant 0 : i32
    %c0_i32_0 = arith.constant 0 : i32
    %c0_i32_1 = arith.constant 0 : i32
    return %c0_i32, %c0_i32_0 : i32, i32
  }
  func.func @transform_5(%arg0: i32) -> (i32, i32) {
    %c0_i32 = arith.constant 0 : i32
    %c0_i32_0 = arith.constant 0 : i32
    %c0_i32_1 = arith.constant 0 : i32
    return %c0_i32, %c0_i32_0 : i32, i32
  }
  func.func @transform_6(%arg0: i32) -> (i32, i32) {
    %c0_i32 = arith.constant 0 : i32
    %c0_i32_0 = arith.constant 0 : i32
    %c0_i32_1 = arith.constant 0 : i32
    return %c0_i32, %c0_i32_0 : i32, i32
  }
  func.func @transform_7(%arg0: i32) -> (i32, i32) {
    %c0_i32 = arith.constant 0 : i32
    %c0_i32_0 = arith.constant 0 : i32
    %c0_i32_1 = arith.constant 0 : i32
    return %c0_i32, %c0_i32_0 : i32, i32
  }
  func.func @transform_8(%arg0: i32) -> (i32, i32) {
    %c0_i32 = arith.constant 0 : i32
    %c0_i32_0 = arith.constant 0 : i32
    %c0_i32_1 = arith.constant 0 : i32
    return %c0_i32, %c0_i32_0 : i32, i32
  }
  func.func @transform_9(%arg0: i32) -> (i32, i32) {
    %c0_i32 = arith.constant 0 : i32
    %c0_i32_0 = arith.constant 0 : i32
    %c0_i32_1 = arith.constant 0 : i32
    return %c0_i32, %c0_i32_0 : i32, i32
  }
  func.func @transform_10(%arg0: i32) -> (i32, i32) {
    %c0_i32 = arith.constant 0 : i32
    %c0_i32_0 = arith.constant 0 : i32
    %c0_i32_1 = arith.constant 0 : i32
    return %c0_i32, %c0_i32_0 : i32, i32
  }
  func.func @transform_11(%arg0: i32) -> (i32, i32) {
    %c0_i32 = arith.constant 0 : i32
    %c0_i32_0 = arith.constant 0 : i32
    %c0_i32_1 = arith.constant 0 : i32
    return %c0_i32, %c0_i32_0 : i32, i32
  }
  func.func @transform_12(%arg0: i32) -> (i32, i32) {
    %c0_i32 = arith.constant 0 : i32
    %c0_i32_0 = arith.constant 0 : i32
    %c0_i32_1 = arith.constant 0 : i32
    return %c0_i32, %c0_i32_0 : i32, i32
  }
  func.func @transform_13(%arg0: i32) -> (i32, i32) {
    %c0_i32 = arith.constant 0 : i32
    %c0_i32_0 = arith.constant 0 : i32
    %c0_i32_1 = arith.constant 0 : i32
    return %c0_i32, %c0_i32_0 : i32, i32
  }
  func.func @transform_14(%arg0: i32) -> (i32, i32) {
    %c0_i32 = arith.constant 0 : i32
    %c0_i32_0 = arith.constant 0 : i32
    %c0_i32_1 = arith.constant 0 : i32
    return %c0_i32, %c0_i32_0 : i32, i32
  }
  func.func @transform_15(%arg0: i32) -> (i32, i32) {
    %c0_i32 = arith.constant 0 : i32
    %c0_i32_0 = arith.constant 0 : i32
    return %arg0, %c0_i32 : i32, i32
  }
}

</mosaic_0001>

<llo_original>
// kernel: digit_recognizer_mlp_forward.1
$region0: #{digit_recognizer_mlp_forward.1}
  #allocation0 [shape = 'u32[]', space=smem, size = 0x4, offset = 0x4, fixed_abs, tag = 'smem constant byte address 0x4 - core index']
  #allocation1 [shape = 'u32[144,128]{1,0:T(1,128)}', space=vmem, size = 0x12000, scoped, tag = 'internal scratch']
  %s0 = inlined_call_operand.vmem [shape: bf16[8,784], index: 0, kind: input, shape index: {}]
  %s1 = inlined_call_operand.vmem [shape: bf16[784,512], index: 1, kind: input, shape index: {}]
  %s2 = inlined_call_operand.vmem [shape: f32[1,512], index: 2, kind: input, shape index: {}]
  %s3 = inlined_call_operand.vmem [shape: f32[1,512], index: 3, kind: input, shape index: {}]
  %s4 = inlined_call_operand.vmem [shape: f32[1,512], index: 4, kind: input, shape index: {}]
  %s5 = inlined_call_operand.vmem [shape: bf16[512,256], index: 5, kind: input, shape index: {}]
  %s6 = inlined_call_operand.vmem [shape: f32[1,256], index: 6, kind: input, shape index: {}]
  %s7 = inlined_call_operand.vmem [shape: f32[1,256], index: 7, kind: input, shape index: {}]
  %s8 = inlined_call_operand.vmem [shape: f32[1,256], index: 8, kind: input, shape index: {}]
  %s9 = inlined_call_operand.vmem [shape: bf16[256,128], index: 9, kind: input, shape index: {}]
  %s10 = inlined_call_operand.vmem [shape: f32[1,128], index: 10, kind: input, shape index: {}]
  %s11 = inlined_call_operand.vmem [shape: f32[1,128], index: 11, kind: input, shape index: {}]
  %s12 = inlined_call_operand.vmem [shape: f32[1,128], index: 12, kind: input, shape index: {}]
  %s13 = inlined_call_operand.vmem [shape: bf16[128,128], index: 13, kind: input, shape index: {}]
  %s14 = inlined_call_operand.vmem [shape: f32[1,128], index: 14, kind: input, shape index: {}]
  %s15 = inlined_call_operand.vmem [shape: f32[8,128], index: 15, kind: output, shape index: {}]
  %s16 = sld [smem:[#allocation0]]
  $region70: #{digit_recognizer_mlp_forward.1} parent=0
    _
  %s18 = ssub.s32 1, %s16
  %s19 = scalar_select 0, %s18, %s16
  // Predicated region
  $region2: #{digit_recognizer_mlp_forward.1} parent=0 // pred_check
    _
  $region3: #{digit_recognizer_mlp_forward.1} parent=0 // pred_check_branch
    %21 = sbr.rel (0) target = $region5
  $region4: #{digit_recognizer_mlp_forward.1} parent=0 // pred_region
    _
  $region5: #{digit_recognizer_mlp_forward.1} parent=0 // pred_fallthru
    _
  // Predicated region
  $region6: #{digit_recognizer_mlp_forward.1} parent=0 // pred_check
    _
  $region7: #{digit_recognizer_mlp_forward.1} parent=0 // pred_check_branch
    %23 = sbr.rel (0) target = $region9
  $region8: #{digit_recognizer_mlp_forward.1} parent=0 // pred_region
    _
  $region9: #{digit_recognizer_mlp_forward.1} parent=0 // pred_fallthru
    _
  // Predicated region
  $region10: #{digit_recognizer_mlp_forward.1} parent=0 // pred_check
    _
  $region11: #{digit_recognizer_mlp_forward.1} parent=0 // pred_check_branch
    %25 = sbr.rel (0) target = $region13
  $region12: #{digit_recognizer_mlp_forward.1} parent=0 // pred_region
    _
  $region13: #{digit_recognizer_mlp_forward.1} parent=0 // pred_fallthru
    _
  // Predicated region
  $region14: #{digit_recognizer_mlp_forward.1} parent=0 // pred_check
    _
  $region15: #{digit_recognizer_mlp_forward.1} parent=0 // pred_check_branch
    %27 = sbr.rel (0) target = $region17
  $region16: #{digit_recognizer_mlp_forward.1} parent=0 // pred_region
    _
  $region17: #{digit_recognizer_mlp_forward.1} parent=0 // pred_fallthru
    _
  // Predicated region
  $region18: #{digit_recognizer_mlp_forward.1} parent=0 // pred_check
    _
  $region19: #{digit_recognizer_mlp_forward.1} parent=0 // pred_check_branch
    %29 = sbr.rel (0) target = $region21
  $region20: #{digit_recognizer_mlp_forward.1} parent=0 // pred_region
    _
  $region21: #{digit_recognizer_mlp_forward.1} parent=0 // pred_fallthru
    _
  // Predicated region
  $region22: #{digit_recognizer_mlp_forward.1} parent=0 // pred_check
    _
  $region23: #{digit_recognizer_mlp_forward.1} parent=0 // pred_check_branch
    %31 = sbr.rel (0) target = $region25
  $region24: #{digit_recognizer_mlp_forward.1} parent=0 // pred_region
    _
  $region25: #{digit_recognizer_mlp_forward.1} parent=0 // pred_fallthru
    _
  // Predicated region
  $region26: #{digit_recognizer_mlp_forward.1} parent=0 // pred_check
    _
  $region27: #{digit_recognizer_mlp_forward.1} parent=0 // pred_check_branch
    %33 = sbr.rel (0) target = $region29
  $region28: #{digit_recognizer_mlp_forward.1} parent=0 // pred_region
    _
  $region29: #{digit_recognizer_mlp_forward.1} parent=0 // pred_fallthru
    _
  // Predicated region
  $region30: #{digit_recognizer_mlp_forward.1} parent=0 // pred_check
    _
  $region31: #{digit_recognizer_mlp_forward.1} parent=0 // pred_check_branch
    %35 = sbr.rel (0) target = $region33
  $region32: #{digit_recognizer_mlp_forward.1} parent=0 // pred_region
    _
  $region33: #{digit_recognizer_mlp_forward.1} parent=0 // pred_fallthru
    _
  // Predicated region
  $region34: #{digit_recognizer_mlp_forward.1} parent=0 // pred_check
    _
  $region35: #{digit_recognizer_mlp_forward.1} parent=0 // pred_check_branch
    %37 = sbr.rel (0) target = $region37
  $region36: #{digit_recognizer_mlp_forward.1} parent=0 // pred_region
    _
  $region37: #{digit_recognizer_mlp_forward.1} parent=0 // pred_fallthru
    _
  // Predicated region
  $region38: #{digit_recognizer_mlp_forward.1} parent=0 // pred_check
    _
  $region39: #{digit_recognizer_mlp_forward.1} parent=0 // pred_check_branch
    %39 = sbr.rel (0) target = $region41
  $region40: #{digit_recognizer_mlp_forward.1} parent=0 // pred_region
    _
  $region41: #{digit_recognizer_mlp_forward.1} parent=0 // pred_fallthru
    _
  // Predicated region
  $region42: #{digit_recognizer_mlp_forward.1} parent=0 // pred_check
    _
  $region43: #{digit_recognizer_mlp_forward.1} parent=0 // pred_check_branch
    %41 = sbr.rel (0) target = $region45
  $region44: #{digit_recognizer_mlp_forward.1} parent=0 // pred_region
    _
  $region45: #{digit_recognizer_mlp_forward.1} parent=0 // pred_fallthru
    _
  // Predicated region
  $region46: #{digit_recognizer_mlp_forward.1} parent=0 // pred_check
    _
  $region47: #{digit_recognizer_mlp_forward.1} parent=0 // pred_check_branch
    %43 = sbr.rel (0) target = $region49
  $region48: #{digit_recognizer_mlp_forward.1} parent=0 // pred_region
    _
  $region49: #{digit_recognizer_mlp_forward.1} parent=0 // pred_fallthru
    _
  // Predicated region
  $region50: #{digit_recognizer_mlp_forward.1} parent=0 // pred_check
    _
  $region51: #{digit_recognizer_mlp_forward.1} parent=0 // pred_check_branch
    %45 = sbr.rel (0) target = $region53
  $region52: #{digit_recognizer_mlp_forward.1} parent=0 // pred_region
    _
  $region53: #{digit_recognizer_mlp_forward.1} parent=0 // pred_fallthru
    _
  // Predicated region
  $region54: #{digit_recognizer_mlp_forward.1} parent=0 // pred_check
    _
  $region55: #{digit_recognizer_mlp_forward.1} parent=0 // pred_check_branch
    %47 = sbr.rel (0) target = $region57
  $region56: #{digit_recognizer_mlp_forward.1} parent=0 // pred_region
    _
  $region57: #{digit_recognizer_mlp_forward.1} parent=0 // pred_fallthru
    _
  // Predicated region
  $region58: #{digit_recognizer_mlp_forward.1} parent=0 // pred_check
    _
  $region59: #{digit_recognizer_mlp_forward.1} parent=0 // pred_check_branch
    %49 = sbr.rel (0) target = $region61
  $region60: #{digit_recognizer_mlp_forward.1} parent=0 // pred_region
    _
  $region61: #{digit_recognizer_mlp_forward.1} parent=0 // pred_fallthru
    _
  %v51 = vld [vmem:[%s0] sm:$0xff]
  %v52 = vld [vmem:[%s0 + $0x8] sm:$0xff]
  %v53 = vld [vmem:[%s0 + $0x10] sm:$0xff]
  %v54 = vld [vmem:[%s0 + $0x18] sm:$0xf]
  %v55 = vld [vmem:[%s1] sm:$0xff]
  %v56 = vld [vmem:[%s1 + $0x8] sm:$0xff]
  %v57 = vld [vmem:[%s1 + $0x10] sm:$0xff]
  %v58 = vld [vmem:[%s1 + $0x18] sm:$0xff]
  %v59 = vld [vmem:[%s1 + $0x20] sm:$0xff]
  %v60 = vld [vmem:[%s1 + $0x28] sm:$0xff]
  %v61 = vld [vmem:[%s1 + $0x30] sm:$0xff]
  %v62 = vld [vmem:[%s1 + $0x38] sm:$0xff]
  %v63 = vld [vmem:[%s1 + $0x40] sm:$0xff]
  %v64 = vld [vmem:[%s1 + $0x48] sm:$0xff]
  %v65 = vld [vmem:[%s1 + $0x50] sm:$0xff]
  %v66 = vld [vmem:[%s1 + $0x58] sm:$0xff]
  %v67 = vld [vmem:[%s1 + $0x60] sm:$0xff]
  %v68 = vld [vmem:[%s1 + $0x68] sm:$0xff]
  %v69 = vld [vmem:[%s1 + $0x70] sm:$0xff]
  %v70 = vld [vmem:[%s1 + $0x78] sm:$0xff]
  %v71 = vld [vmem:[%s1 + $0x80] sm:$0xff]
  %v72 = vld [vmem:[%s1 + $0x88] sm:$0xff]
  %v73 = vld [vmem:[%s1 + $0x90] sm:$0xff]
  %v74 = vld [vmem:[%s1 + $0x98] sm:$0xff]
  %v75 = vld [vmem:[%s1 + $0xa0] sm:$0xff]
  %v76 = vld [vmem:[%s1 + $0xa8] sm:$0xff]
  %v77 = vld [vmem:[%s1 + $0xb0] sm:$0xff]
  %v78 = vld [vmem:[%s1 + $0xb8] sm:$0xff]
  %v79 = vld [vmem:[%s1 + $0xc0] sm:$0xff]
  %v80 = vld [vmem:[%s1 + $0xc8] sm:$0xff]
  %v81 = vld [vmem:[%s1 + $0xd0] sm:$0xff]
  %v82 = vld [vmem:[%s1 + $0xd8] sm:$0xff]
  %v83 = vld [vmem:[%s1 + $0xe0] sm:$0xff]
  %v84 = vld [vmem:[%s1 + $0xe8] sm:$0xff]
  %v85 = vld [vmem:[%s1 + $0xf0] sm:$0xff]
  %v86 = vld [vmem:[%s1 + $0xf8] sm:$0xff]
  %v87 = vld [vmem:[%s1 + $0x100] sm:$0xff]
  %v88 = vld [vmem:[%s1 + $0x108] sm:$0xff]
  %v89 = vld [vmem:[%s1 + $0x110] sm:$0xff]
  %v90 = vld [vmem:[%s1 + $0x118] sm:$0xff]
  %v91 = vld [vmem:[%s1 + $0x120] sm:$0xff]
  %v92 = vld [vmem:[%s1 + $0x128] sm:$0xff]
  %v93 = vld [vmem:[%s1 + $0x130] sm:$0xff]
  %v94 = vld [vmem:[%s1 + $0x138] sm:$0xff]
  %v95 = vld [vmem:[%s1 + $0x140] sm:$0xff]
  %v96 = vld [vmem:[%s1 + $0x148] sm:$0xff]
  %v97 = vld [vmem:[%s1 + $0x150] sm:$0xff]
  %v98 = vld [vmem:[%s1 + $0x158] sm:$0xff]
  %v99 = vld [vmem:[%s1 + $0x160] sm:$0xff]
  %v100 = vld [vmem:[%s1 + $0x168] sm:$0xff]
  %v101 = vld [vmem:[%s1 + $0x170] sm:$0xff]
  %v102 = vld [vmem:[%s1 + $0x178] sm:$0xff]
  %v103 = vld [vmem:[%s1 + $0x180] sm:$0xff]
  %v104 = vld [vmem:[%s1 + $0x188] sm:$0xff]
  %v105 = vld [vmem:[%s1 + $0x190] sm:$0xff]
  %v106 = vld [vmem:[%s1 + $0x198] sm:$0xff]
  %v107 = vld [vmem:[%s1 + $0x1a0] sm:$0xff]
  %v108 = vld [vmem:[%s1 + $0x1a8] sm:$0xff]
  %v109 = vld [vmem:[%s1 + $0x1b0] sm:$0xff]
  %v110 = vld [vmem:[%s1 + $0x1b8] sm:$0xff]
  %v111 = vld [vmem:[%s1 + $0x1c0] sm:$0xff]
  %v112 = vld [vmem:[%s1 + $0x1c8] sm:$0xff]
  %v113 = vld [vmem:[%s1 + $0x1d0] sm:$0xff]
  %v114 = vld [vmem:[%s1 + $0x1d8] sm:$0xff]
  %v115 = vld [vmem:[%s1 + $0x1e0] sm:$0xff]
  %v116 = vld [vmem:[%s1 + $0x1e8] sm:$0xff]
  %v117 = vld [vmem:[%s1 + $0x1f0] sm:$0xff]
  %v118 = vld [vmem:[%s1 + $0x1f8] sm:$0xff]
  %v119 = vld [vmem:[%s1 + $0x200] sm:$0xff]
  %v120 = vld [vmem:[%s1 + $0x208] sm:$0xff]
  %v121 = vld [vmem:[%s1 + $0x210] sm:$0xff]
  %v122 = vld [vmem:[%s1 + $0x218] sm:$0xff]
  %v123 = vld [vmem:[%s1 + $0x220] sm:$0xff]
  %v124 = vld [vmem:[%s1 + $0x228] sm:$0xff]
  %v125 = vld [vmem:[%s1 + $0x230] sm:$0xff]
  %v126 = vld [vmem:[%s1 + $0x238] sm:$0xff]
  %v127 = vld [vmem:[%s1 + $0x240] sm:$0xff]
  %v128 = vld [vmem:[%s1 + $0x248] sm:$0xff]
  %v129 = vld [vmem:[%s1 + $0x250] sm:$0xff]
  %v130 = vld [vmem:[%s1 + $0x258] sm:$0xff]
  %v131 = vld [vmem:[%s1 + $0x260] sm:$0xff]
  %v132 = vld [vmem:[%s1 + $0x268] sm:$0xff]
  %v133 = vld [vmem:[%s1 + $0x270] sm:$0xff]
  %v134 = vld [vmem:[%s1 + $0x278] sm:$0xff]
  %v135 = vld [vmem:[%s1 + $0x280] sm:$0xff]
  %v136 = vld [vmem:[%s1 + $0x288] sm:$0xff]
  %v137 = vld [vmem:[%s1 + $0x290] sm:$0xff]
  %v138 = vld [vmem:[%s1 + $0x298] sm:$0xff]
  %v139 = vld [vmem:[%s1 + $0x2a0] sm:$0xff]
  %v140 = vld [vmem:[%s1 + $0x2a8] sm:$0xff]
  %v141 = vld [vmem:[%s1 + $0x2b0] sm:$0xff]
  %v142 = vld [vmem:[%s1 + $0x2b8] sm:$0xff]
  %v143 = vld [vmem:[%s1 + $0x2c0] sm:$0xff]
  %v144 = vld [vmem:[%s1 + $0x2c8] sm:$0xff]
  %v145 = vld [vmem:[%s1 + $0x2d0] sm:$0xff]
  %v146 = vld [vmem:[%s1 + $0x2d8] sm:$0xff]
  %v147 = vld [vmem:[%s1 + $0x2e0] sm:$0xff]
  %v148 = vld [vmem:[%s1 + $0x2e8] sm:$0xff]
  %v149 = vld [vmem:[%s1 + $0x2f0] sm:$0xff]
  %v150 = vld [vmem:[%s1 + $0x2f8] sm:$0xff]
  %v151 = vld [vmem:[%s1 + $0x300] sm:$0xff]
  %v152 = vld [vmem:[%s1 + $0x308] sm:$0xff]
  %v153 = vld [vmem:[%s1 + $0x310] sm:$0xff]
  %v154 = vld [vmem:[%s1 + $0x318] sm:$0xff]
  %v155 = vld [vmem:[%s1 + $0x320] sm:$0xff]
  %v156 = vld [vmem:[%s1 + $0x328] sm:$0xff]
  %v157 = vld [vmem:[%s1 + $0x330] sm:$0xff]
  %v158 = vld [vmem:[%s1 + $0x338] sm:$0xff]
  %v159 = vld [vmem:[%s1 + $0x340] sm:$0xff]
  %v160 = vld [vmem:[%s1 + $0x348] sm:$0xff]
  %v161 = vld [vmem:[%s1 + $0x350] sm:$0xff]
  %v162 = vld [vmem:[%s1 + $0x358] sm:$0xff]
  %v163 = vld [vmem:[%s1 + $0x360] sm:$0xff]
  %v164 = vld [vmem:[%s1 + $0x368] sm:$0xff]
  %v165 = vld [vmem:[%s1 + $0x370] sm:$0xff]
  %v166 = vld [vmem:[%s1 + $0x378] sm:$0xff]
  %v167 = vld [vmem:[%s1 + $0x380] sm:$0xff]
  %v168 = vld [vmem:[%s1 + $0x388] sm:$0xff]
  %v169 = vld [vmem:[%s1 + $0x390] sm:$0xff]
  %v170 = vld [vmem:[%s1 + $0x398] sm:$0xff]
  %v171 = vld [vmem:[%s1 + $0x3a0] sm:$0xff]
  %v172 = vld [vmem:[%s1 + $0x3a8] sm:$0xff]
  %v173 = vld [vmem:[%s1 + $0x3b0] sm:$0xff]
  %v174 = vld [vmem:[%s1 + $0x3b8] sm:$0xff]
  %v175 = vld [vmem:[%s1 + $0x3c0] sm:$0xff]
  %v176 = vld [vmem:[%s1 + $0x3c8] sm:$0xff]
  %v177 = vld [vmem:[%s1 + $0x3d0] sm:$0xff]
  %v178 = vld [vmem:[%s1 + $0x3d8] sm:$0xff]
  %v179 = vld [vmem:[%s1 + $0x3e0] sm:$0xff]
  %v180 = vld [vmem:[%s1 + $0x3e8] sm:$0xff]
  %v181 = vld [vmem:[%s1 + $0x3f0] sm:$0xff]
  %v182 = vld [vmem:[%s1 + $0x3f8] sm:$0xff]
  %v183 = vld [vmem:[%s1 + $0x400] sm:$0xff]
  %v184 = vld [vmem:[%s1 + $0x408] sm:$0xff]
  %v185 = vld [vmem:[%s1 + $0x410] sm:$0xff]
  %v186 = vld [vmem:[%s1 + $0x418] sm:$0xff]
  %v187 = vld [vmem:[%s1 + $0x420] sm:$0xff]
  %v188 = vld [vmem:[%s1 + $0x428] sm:$0xff]
  %v189 = vld [vmem:[%s1 + $0x430] sm:$0xff]
  %v190 = vld [vmem:[%s1 + $0x438] sm:$0xff]
  %v191 = vld [vmem:[%s1 + $0x440] sm:$0xff]
  %v192 = vld [vmem:[%s1 + $0x448] sm:$0xff]
  %v193 = vld [vmem:[%s1 + $0x450] sm:$0xff]
  %v194 = vld [vmem:[%s1 + $0x458] sm:$0xff]
  %v195 = vld [vmem:[%s1 + $0x460] sm:$0xff]
  %v196 = vld [vmem:[%s1 + $0x468] sm:$0xff]
  %v197 = vld [vmem:[%s1 + $0x470] sm:$0xff]
  %v198 = vld [vmem:[%s1 + $0x478] sm:$0xff]
  %v199 = vld [vmem:[%s1 + $0x480] sm:$0xff]
  %v200 = vld [vmem:[%s1 + $0x488] sm:$0xff]
  %v201 = vld [vmem:[%s1 + $0x490] sm:$0xff]
  %v202 = vld [vmem:[%s1 + $0x498] sm:$0xff]
  %v203 = vld [vmem:[%s1 + $0x4a0] sm:$0xff]
  %v204 = vld [vmem:[%s1 + $0x4a8] sm:$0xff]
  %v205 = vld [vmem:[%s1 + $0x4b0] sm:$0xff]
  %v206 = vld [vmem:[%s1 + $0x4b8] sm:$0xff]
  %v207 = vld [vmem:[%s1 + $0x4c0] sm:$0xff]
  %v208 = vld [vmem:[%s1 + $0x4c8] sm:$0xff]
  %v209 = vld [vmem:[%s1 + $0x4d0] sm:$0xff]
  %v210 = vld [vmem:[%s1 + $0x4d8] sm:$0xff]
  %v211 = vld [vmem:[%s1 + $0x4e0] sm:$0xff]
  %v212 = vld [vmem:[%s1 + $0x4e8] sm:$0xff]
  %v213 = vld [vmem:[%s1 + $0x4f0] sm:$0xff]
  %v214 = vld [vmem:[%s1 + $0x4f8] sm:$0xff]
  %v215 = vld [vmem:[%s1 + $0x500] sm:$0xff]
  %v216 = vld [vmem:[%s1 + $0x508] sm:$0xff]
  %v217 = vld [vmem:[%s1 + $0x510] sm:$0xff]
  %v218 = vld [vmem:[%s1 + $0x518] sm:$0xff]
  %v219 = vld [vmem:[%s1 + $0x520] sm:$0xff]
  %v220 = vld [vmem:[%s1 + $0x528] sm:$0xff]
  %v221 = vld [vmem:[%s1 + $0x530] sm:$0xff]
  %v222 = vld [vmem:[%s1 + $0x538] sm:$0xff]
  %v223 = vld [vmem:[%s1 + $0x540] sm:$0xff]
  %v224 = vld [vmem:[%s1 + $0x548] sm:$0xff]
  %v225 = vld [vmem:[%s1 + $0x550] sm:$0xff]
  %v226 = vld [vmem:[%s1 + $0x558] sm:$0xff]
  %v227 = vld [vmem:[%s1 + $0x560] sm:$0xff]
  %v228 = vld [vmem:[%s1 + $0x568] sm:$0xff]
  %v229 = vld [vmem:[%s1 + $0x570] sm:$0xff]
  %v230 = vld [vmem:[%s1 + $0x578] sm:$0xff]
  %v231 = vld [vmem:[%s1 + $0x580] sm:$0xff]
  %v232 = vld [vmem:[%s1 + $0x588] sm:$0xff]
  %v233 = vld [vmem:[%s1 + $0x590] sm:$0xff]
  %v234 = vld [vmem:[%s1 + $0x598] sm:$0xff]
  %v235 = vld [vmem:[%s1 + $0x5a0] sm:$0xff]
  %v236 = vld [vmem:[%s1 + $0x5a8] sm:$0xff]
  %v237 = vld [vmem:[%s1 + $0x5b0] sm:$0xff]
  %v238 = vld [vmem:[%s1 + $0x5b8] sm:$0xff]
  %v239 = vld [vmem:[%s1 + $0x5c0] sm:$0xff]
  %v240 = vld [vmem:[%s1 + $0x5c8] sm:$0xff]
  %v241 = vld [vmem:[%s1 + $0x5d0] sm:$0xff]
  %v242 = vld [vmem:[%s1 + $0x5d8] sm:$0xff]
  %v243 = vld [vmem:[%s1 + $0x5e0] sm:$0xff]
  %v244 = vld [vmem:[%s1 + $0x5e8] sm:$0xff]
  %v245 = vld [vmem:[%s1 + $0x5f0] sm:$0xff]
  %v246 = vld [vmem:[%s1 + $0x5f8] sm:$0xff]
  %v247 = vld [vmem:[%s1 + $0x600] sm:$0xff]
  %v248 = vld [vmem:[%s1 + $0x608] sm:$0xff]
  %v249 = vld [vmem:[%s1 + $0x610] sm:$0xff]
  %v250 = vld [vmem:[%s1 + $0x618] sm:$0xff]
  %v251 = vld [vmem:[%s2] sm:$0xf]
  %v253 = vlaneseq
  %v254 = vshrl.u32 %v253, 7
  %v255 = vsub.s32 0, %v254
  %v256 = vrot.slane %v251, %v255
  %v257 = vlaneseq
  %v258 = vshrl.u32 %v257, 7
  %v259 = vsub.s32 1, %v258
  %v260 = vrot.slane %v251, %v259
  %v261 = vlaneseq
  %v262 = vshrl.u32 %v261, 7
  %v263 = vsub.s32 2, %v262
  %v264 = vrot.slane %v251, %v263
  %v265 = vlaneseq
  %v266 = vshrl.u32 %v265, 7
  %v267 = vsub.s32 3, %v266
  %v268 = vrot.slane %v251, %v267
  %v277 = vunpack.c.l.b16 %v51
  %v278 = vunpack.c.h.b16 %v51
  %v279 = vunpack.c.l.b16 %v52
  %v280 = vunpack.c.h.b16 %v52
  %v281 = vunpack.c.l.b16 %v53
  %v282 = vunpack.c.h.b16 %v53
  %v283 = vunpack.c.l.b16 %v54
  %v284 = vpack.c.b16 %v277, %v277
  %v285 = vpack.c.b16 %v278, %v278
  %v286 = vpack.c.b16 %v279, %v279
  %v287 = vpack.c.b16 %v280, %v280
  %v288 = vpack.c.b16 %v281, %v281
  %v289 = vpack.c.b16 %v282, %v282
  %v290 = vpack.c.b16 %v283, %v283
  %v493 = vunpack.c.l.b16 %v55
  %v494 = vunpack.c.h.b16 %v55
  %v495 = vunpack.c.l.b16 %v56
  %v496 = vunpack.c.h.b16 %v56
  %v497 = vunpack.c.l.b16 %v57
  %v498 = vunpack.c.h.b16 %v57
  %v499 = vunpack.c.l.b16 %v58
  %v500 = vunpack.c.h.b16 %v58
  %v501 = vunpack.c.l.b16 %v59
  %v502 = vunpack.c.h.b16 %v59
  %v503 = vunpack.c.l.b16 %v60
  %v504 = vunpack.c.h.b16 %v60
  %v505 = vunpack.c.l.b16 %v61
  %v506 = vunpack.c.h.b16 %v61
  %v507 = vunpack.c.l.b16 %v62
  %v508 = vunpack.c.h.b16 %v62
  %v509 = vunpack.c.l.b16 %v63
  %v510 = vunpack.c.h.b16 %v63
  %v511 = vunpack.c.l.b16 %v64
  %v512 = vunpack.c.h.b16 %v64
  %v513 = vunpack.c.l.b16 %v65
  %v514 = vunpack.c.h.b16 %v65
  %v515 = vunpack.c.l.b16 %v66
  %v516 = vunpack.c.h.b16 %v66
  %v517 = vunpack.c.l.b16 %v67
  %v518 = vunpack.c.h.b16 %v67
  %v519 = vunpack.c.l.b16 %v68
  %v520 = vunpack.c.h.b16 %v68
  %v521 = vunpack.c.l.b16 %v69
  %v522 = vunpack.c.h.b16 %v69
  %v523 = vunpack.c.l.b16 %v70
  %v524 = vunpack.c.h.b16 %v70
  %v525 = vunpack.c.l.b16 %v71
  %v526 = vunpack.c.h.b16 %v71
  %v527 = vunpack.c.l.b16 %v72
  %v528 = vunpack.c.h.b16 %v72
  %v529 = vunpack.c.l.b16 %v73
  %v530 = vunpack.c.h.b16 %v73
  %v531 = vunpack.c.l.b16 %v74
  %v532 = vunpack.c.h.b16 %v74
  %v533 = vunpack.c.l.b16 %v75
  %v534 = vunpack.c.h.b16 %v75
  %v535 = vunpack.c.l.b16 %v76
  %v536 = vunpack.c.h.b16 %v76
  %v537 = vunpack.c.l.b16 %v77
  %v538 = vunpack.c.h.b16 %v77
  %v539 = vunpack.c.l.b16 %v78
  %v540 = vunpack.c.h.b16 %v78
  %v541 = vunpack.c.l.b16 %v79
  %v542 = vunpack.c.h.b16 %v79
  %v543 = vunpack.c.l.b16 %v80
  %v544 = vunpack.c.h.b16 %v80
  %v545 = vunpack.c.l.b16 %v81
  %v546 = vunpack.c.h.b16 %v81
  %v547 = vunpack.c.l.b16 %v82
  %v548 = vunpack.c.h.b16 %v82
  %v549 = vunpack.c.l.b16 %v83
  %v550 = vunpack.c.h.b16 %v83
  %v551 = vunpack.c.l.b16 %v84
  %v552 = vunpack.c.h.b16 %v84
  %v553 = vunpack.c.l.b16 %v85
  %v554 = vunpack.c.h.b16 %v85
  %v555 = vunpack.c.l.b16 %v86
  %v556 = vunpack.c.h.b16 %v86
  %v557 = vunpack.c.l.b16 %v87
  %v558 = vunpack.c.h.b16 %v87
  %v559 = vunpack.c.l.b16 %v88
  %v560 = vunpack.c.h.b16 %v88
  %v561 = vunpack.c.l.b16 %v89
  %v562 = vunpack.c.h.b16 %v89
  %v563 = vunpack.c.l.b16 %v90
  %v564 = vunpack.c.h.b16 %v90
  %v565 = vunpack.c.l.b16 %v91
  %v566 = vunpack.c.h.b16 %v91
  %v567 = vunpack.c.l.b16 %v92
  %v568 = vunpack.c.h.b16 %v92
  %v569 = vunpack.c.l.b16 %v93
  %v570 = vunpack.c.h.b16 %v93
  %v571 = vunpack.c.l.b16 %v94
  %v572 = vunpack.c.h.b16 %v94
  %v573 = vunpack.c.l.b16 %v95
  %v574 = vunpack.c.h.b16 %v95
  %v575 = vunpack.c.l.b16 %v96
  %v576 = vunpack.c.h.b16 %v96
  %v577 = vunpack.c.l.b16 %v97
  %v578 = vunpack.c.h.b16 %v97
  %v579 = vunpack.c.l.b16 %v98
  %v580 = vunpack.c.h.b16 %v98
  %v581 = vunpack.c.l.b16 %v99
  %v582 = vunpack.c.h.b16 %v99
  %v583 = vunpack.c.l.b16 %v100
  %v584 = vunpack.c.h.b16 %v100
  %v585 = vunpack.c.l.b16 %v101
  %v586 = vunpack.c.h.b16 %v101
  %v587 = vunpack.c.l.b16 %v102
  %v588 = vunpack.c.h.b16 %v102
  %v589 = vunpack.c.l.b16 %v103
  %v590 = vunpack.c.h.b16 %v103
  %v591 = vunpack.c.l.b16 %v104
  %v592 = vunpack.c.h.b16 %v104
  %v593 = vunpack.c.l.b16 %v105
  %v594 = vunpack.c.h.b16 %v105
  %v595 = vunpack.c.l.b16 %v106
  %v596 = vunpack.c.h.b16 %v106
  %v597 = vunpack.c.l.b16 %v107
  %v598 = vunpack.c.h.b16 %v107
  %v599 = vunpack.c.l.b16 %v108
  %v600 = vunpack.c.h.b16 %v108
  %v601 = vunpack.c.l.b16 %v109
  %v602 = vunpack.c.h.b16 %v109
  %v603 = vunpack.c.l.b16 %v110
  %v604 = vunpack.c.h.b16 %v110
  %v605 = vunpack.c.l.b16 %v111
  %v606 = vunpack.c.h.b16 %v111
  %v607 = vunpack.c.l.b16 %v112
  %v608 = vunpack.c.h.b16 %v112
  %v609 = vunpack.c.l.b16 %v113
  %v610 = vunpack.c.h.b16 %v113
  %v611 = vunpack.c.l.b16 %v114
  %v612 = vunpack.c.h.b16 %v114
  %v613 = vunpack.c.l.b16 %v115
  %v614 = vunpack.c.h.b16 %v115
  %v615 = vunpack.c.l.b16 %v116
  %v616 = vunpack.c.h.b16 %v116
  %v617 = vunpack.c.l.b16 %v117
  %v618 = vunpack.c.h.b16 %v117
  %v619 = vunpack.c.l.b16 %v118
  %v620 = vunpack.c.h.b16 %v118
  %v621 = vunpack.c.l.b16 %v119
  %v622 = vunpack.c.h.b16 %v119
  %v623 = vunpack.c.l.b16 %v120
  %v624 = vunpack.c.h.b16 %v120
  %v625 = vunpack.c.l.b16 %v121
  %v626 = vunpack.c.h.b16 %v121
  %v627 = vunpack.c.l.b16 %v122
  %v628 = vunpack.c.h.b16 %v122
  %v629 = vunpack.c.l.b16 %v123
  %v630 = vunpack.c.h.b16 %v123
  %v631 = vunpack.c.l.b16 %v124
  %v632 = vunpack.c.h.b16 %v124
  %v633 = vunpack.c.l.b16 %v125
  %v634 = vunpack.c.h.b16 %v125
  %v635 = vunpack.c.l.b16 %v126
  %v636 = vunpack.c.h.b16 %v126
  %v637 = vunpack.c.l.b16 %v127
  %v638 = vunpack.c.h.b16 %v127
  %v639 = vunpack.c.l.b16 %v128
  %v640 = vunpack.c.h.b16 %v128
  %v641 = vunpack.c.l.b16 %v129
  %v642 = vunpack.c.h.b16 %v129
  %v643 = vunpack.c.l.b16 %v130
  %v644 = vunpack.c.h.b16 %v130
  %v645 = vunpack.c.l.b16 %v131
  %v646 = vunpack.c.h.b16 %v131
  %v647 = vunpack.c.l.b16 %v132
  %v648 = vunpack.c.h.b16 %v132
  %v649 = vunpack.c.l.b16 %v133
  %v650 = vunpack.c.h.b16 %v133
  %v651 = vunpack.c.l.b16 %v134
  %v652 = vunpack.c.h.b16 %v134
  %v653 = vunpack.c.l.b16 %v135
  %v654 = vunpack.c.h.b16 %v135
  %v655 = vunpack.c.l.b16 %v136
  %v656 = vunpack.c.h.b16 %v136
  %v657 = vunpack.c.l.b16 %v137
  %v658 = vunpack.c.h.b16 %v137
  %v659 = vunpack.c.l.b16 %v138
  %v660 = vunpack.c.h.b16 %v138
  %v661 = vunpack.c.l.b16 %v139
  %v662 = vunpack.c.h.b16 %v139
  %v663 = vunpack.c.l.b16 %v140
  %v664 = vunpack.c.h.b16 %v140
  %v665 = vunpack.c.l.b16 %v141
  %v666 = vunpack.c.h.b16 %v141
  %v667 = vunpack.c.l.b16 %v142
  %v668 = vunpack.c.h.b16 %v142
  %v669 = vunpack.c.l.b16 %v143
  %v670 = vunpack.c.h.b16 %v143
  %v671 = vunpack.c.l.b16 %v144
  %v672 = vunpack.c.h.b16 %v144
  %v673 = vunpack.c.l.b16 %v145
  %v674 = vunpack.c.h.b16 %v145
  %v675 = vunpack.c.l.b16 %v146
  %v676 = vunpack.c.h.b16 %v146
  %v677 = vunpack.c.l.b16 %v147
  %v678 = vunpack.c.h.b16 %v147
  %v679 = vunpack.c.l.b16 %v148
  %v680 = vunpack.c.h.b16 %v148
  %v681 = vunpack.c.l.b16 %v149
  %v682 = vunpack.c.h.b16 %v149
  %v683 = vunpack.c.l.b16 %v150
  %v684 = vunpack.c.h.b16 %v150
  %v685 = vunpack.c.l.b16 %v151
  %v686 = vunpack.c.h.b16 %v151
  %v687 = vunpack.c.l.b16 %v152
  %v688 = vunpack.c.h.b16 %v152
  %v689 = vunpack.c.l.b16 %v153
  %v690 = vunpack.c.h.b16 %v153
  %v691 = vunpack.c.l.b16 %v154
  %v692 = vunpack.c.h.b16 %v154
  %v693 = vunpack.c.l.b16 %v155
  %v694 = vunpack.c.h.b16 %v155
  %v695 = vunpack.c.l.b16 %v156
  %v696 = vunpack.c.h.b16 %v156
  %v697 = vunpack.c.l.b16 %v157
  %v698 = vunpack.c.h.b16 %v157
  %v699 = vunpack.c.l.b16 %v158
  %v700 = vunpack.c.h.b16 %v158
  %v701 = vunpack.c.l.b16 %v159
  %v702 = vunpack.c.h.b16 %v159
  %v703 = vunpack.c.l.b16 %v160
  %v704 = vunpack.c.h.b16 %v160
  %v705 = vunpack.c.l.b16 %v161
  %v706 = vunpack.c.h.b16 %v161
  %v707 = vunpack.c.l.b16 %v162
  %v708 = vunpack.c.h.b16 %v162
  %v709 = vunpack.c.l.b16 %v163
  %v710 = vunpack.c.h.b16 %v163
  %v711 = vunpack.c.l.b16 %v164
  %v712 = vunpack.c.h.b16 %v164
  %v713 = vunpack.c.l.b16 %v165
  %v714 = vunpack.c.h.b16 %v165
  %v715 = vunpack.c.l.b16 %v166
  %v716 = vunpack.c.h.b16 %v166
  %v717 = vunpack.c.l.b16 %v167
  %v718 = vunpack.c.h.b16 %v167
  %v719 = vunpack.c.l.b16 %v168
  %v720 = vunpack.c.h.b16 %v168
  %v721 = vunpack.c.l.b16 %v169
  %v722 = vunpack.c.h.b16 %v169
  %v723 = vunpack.c.l.b16 %v170
  %v724 = vunpack.c.h.b16 %v170
  %v725 = vunpack.c.l.b16 %v171
  %v726 = vunpack.c.h.b16 %v171
  %v727 = vunpack.c.l.b16 %v172
  %v728 = vunpack.c.h.b16 %v172
  %v729 = vunpack.c.l.b16 %v173
  %v730 = vunpack.c.h.b16 %v173
  %v731 = vunpack.c.l.b16 %v174
  %v732 = vunpack.c.h.b16 %v174
  %v733 = vunpack.c.l.b16 %v175
  %v734 = vunpack.c.h.b16 %v175
  %v735 = vunpack.c.l.b16 %v176
  %v736 = vunpack.c.h.b16 %v176
  %v737 = vunpack.c.l.b16 %v177
  %v738 = vunpack.c.h.b16 %v177
  %v739 = vunpack.c.l.b16 %v178
  %v740 = vunpack.c.h.b16 %v178
  %v741 = vunpack.c.l.b16 %v179
  %v742 = vunpack.c.h.b16 %v179
  %v743 = vunpack.c.l.b16 %v180
  %v744 = vunpack.c.h.b16 %v180
  %v745 = vunpack.c.l.b16 %v181
  %v746 = vunpack.c.h.b16 %v181
  %v747 = vunpack.c.l.b16 %v182
  %v748 = vunpack.c.h.b16 %v182
  %v749 = vunpack.c.l.b16 %v183
  %v750 = vunpack.c.h.b16 %v183
  %v751 = vunpack.c.l.b16 %v184
  %v752 = vunpack.c.h.b16 %v184
  %v753 = vunpack.c.l.b16 %v185
  %v754 = vunpack.c.h.b16 %v185
  %v755 = vunpack.c.l.b16 %v186
  %v756 = vunpack.c.h.b16 %v186
  %v757 = vunpack.c.l.b16 %v187
  %v758 = vunpack.c.h.b16 %v187
  %v759 = vunpack.c.l.b16 %v188
  %v760 = vunpack.c.h.b16 %v188
  %v761 = vunpack.c.l.b16 %v189
  %v762 = vunpack.c.h.b16 %v189
  %v763 = vunpack.c.l.b16 %v190
  %v764 = vunpack.c.h.b16 %v190
  %v765 = vunpack.c.l.b16 %v191
  %v766 = vunpack.c.h.b16 %v191
  %v767 = vunpack.c.l.b16 %v192
  %v768 = vunpack.c.h.b16 %v192
  %v769 = vunpack.c.l.b16 %v193
  %v770 = vunpack.c.h.b16 %v193
  %v771 = vunpack.c.l.b16 %v194
  %v772 = vunpack.c.h.b16 %v194
  %v773 = vunpack.c.l.b16 %v195
  %v774 = vunpack.c.h.b16 %v195
  %v775 = vunpack.c.l.b16 %v196
  %v776 = vunpack.c.h.b16 %v196
  %v777 = vunpack.c.l.b16 %v197
  %v778 = vunpack.c.h.b16 %v197
  %v779 = vunpack.c.l.b16 %v198
  %v780 = vunpack.c.h.b16 %v198
  %v781 = vunpack.c.l.b16 %v199
  %v782 = vunpack.c.h.b16 %v199
  %v783 = vunpack.c.l.b16 %v200
  %v784 = vunpack.c.h.b16 %v200
  %v785 = vunpack.c.l.b16 %v201
  %v786 = vunpack.c.h.b16 %v201
  %v787 = vunpack.c.l.b16 %v202
  %v788 = vunpack.c.h.b16 %v202
  %v789 = vunpack.c.l.b16 %v203
  %v790 = vunpack.c.h.b16 %v203
  %v791 = vunpack.c.l.b16 %v204
  %v792 = vunpack.c.h.b16 %v204
  %v793 = vunpack.c.l.b16 %v205
  %v794 = vunpack.c.h.b16 %v205
  %v795 = vunpack.c.l.b16 %v206
  %v796 = vunpack.c.h.b16 %v206
  %v797 = vunpack.c.l.b16 %v207
  %v798 = vunpack.c.h.b16 %v207
  %v799 = vunpack.c.l.b16 %v208
  %v800 = vunpack.c.h.b16 %v208
  %v801 = vunpack.c.l.b16 %v209
  %v802 = vunpack.c.h.b16 %v209
  %v803 = vunpack.c.l.b16 %v210
  %v804 = vunpack.c.h.b16 %v210
  %v805 = vunpack.c.l.b16 %v211
  %v806 = vunpack.c.h.b16 %v211
  %v807 = vunpack.c.l.b16 %v212
  %v808 = vunpack.c.h.b16 %v212
  %v809 = vunpack.c.l.b16 %v213
  %v810 = vunpack.c.h.b16 %v213
  %v811 = vunpack.c.l.b16 %v214
  %v812 = vunpack.c.h.b16 %v214
  %v813 = vunpack.c.l.b16 %v215
  %v814 = vunpack.c.h.b16 %v215
  %v815 = vunpack.c.l.b16 %v216
  %v816 = vunpack.c.h.b16 %v216
  %v817 = vunpack.c.l.b16 %v217
  %v818 = vunpack.c.h.b16 %v217
  %v819 = vunpack.c.l.b16 %v218
  %v820 = vunpack.c.h.b16 %v218
  %v821 = vunpack.c.l.b16 %v219
  %v822 = vunpack.c.h.b16 %v219
  %v823 = vunpack.c.l.b16 %v220
  %v824 = vunpack.c.h.b16 %v220
  %v825 = vunpack.c.l.b16 %v221
  %v826 = vunpack.c.h.b16 %v221
  %v827 = vunpack.c.l.b16 %v222
  %v828 = vunpack.c.h.b16 %v222
  %v829 = vunpack.c.l.b16 %v223
  %v830 = vunpack.c.h.b16 %v223
  %v831 = vunpack.c.l.b16 %v224
  %v832 = vunpack.c.h.b16 %v224
  %v833 = vunpack.c.l.b16 %v225
  %v834 = vunpack.c.h.b16 %v225
  %v835 = vunpack.c.l.b16 %v226
  %v836 = vunpack.c.h.b16 %v226
  %v837 = vunpack.c.l.b16 %v227
  %v838 = vunpack.c.h.b16 %v227
  %v839 = vunpack.c.l.b16 %v228
  %v840 = vunpack.c.h.b16 %v228
  %v841 = vunpack.c.l.b16 %v229
  %v842 = vunpack.c.h.b16 %v229
  %v843 = vunpack.c.l.b16 %v230
  %v844 = vunpack.c.h.b16 %v230
  %v845 = vunpack.c.l.b16 %v231
  %v846 = vunpack.c.h.b16 %v231
  %v847 = vunpack.c.l.b16 %v232
  %v848 = vunpack.c.h.b16 %v232
  %v849 = vunpack.c.l.b16 %v233
  %v850 = vunpack.c.h.b16 %v233
  %v851 = vunpack.c.l.b16 %v234
  %v852 = vunpack.c.h.b16 %v234
  %v853 = vunpack.c.l.b16 %v235
  %v854 = vunpack.c.h.b16 %v235
  %v855 = vunpack.c.l.b16 %v236
  %v856 = vunpack.c.h.b16 %v236
  %v857 = vunpack.c.l.b16 %v237
  %v858 = vunpack.c.h.b16 %v237
  %v859 = vunpack.c.l.b16 %v238
  %v860 = vunpack.c.h.b16 %v238
  %v861 = vunpack.c.l.b16 %v239
  %v862 = vunpack.c.h.b16 %v239
  %v863 = vunpack.c.l.b16 %v240
  %v864 = vunpack.c.h.b16 %v240
  %v865 = vunpack.c.l.b16 %v241
  %v866 = vunpack.c.h.b16 %v241
  %v867 = vunpack.c.l.b16 %v242
  %v868 = vunpack.c.h.b16 %v242
  %v869 = vunpack.c.l.b16 %v243
  %v870 = vunpack.c.h.b16 %v243
  %v871 = vunpack.c.l.b16 %v244
  %v872 = vunpack.c.h.b16 %v244
  %v873 = vunpack.c.l.b16 %v245
  %v874 = vunpack.c.h.b16 %v245
  %v875 = vunpack.c.l.b16 %v246
  %v876 = vunpack.c.h.b16 %v246
  %v877 = vunpack.c.l.b16 %v247
  %v878 = vunpack.c.h.b16 %v247
  %v879 = vunpack.c.l.b16 %v248
  %v880 = vunpack.c.h.b16 %v248
  %v881 = vunpack.c.l.b16 %v249
  %v882 = vunpack.c.h.b16 %v249
  %v883 = vunpack.c.l.b16 %v250
  %v884 = vunpack.c.h.b16 %v250
  %v885 = vpack.c.b16 %v497, %v493
  %v886 = vpack.c.b16 %v498, %v494
  %v887 = vpack.c.b16 %v499, %v495
  %v888 = vpack.c.b16 %v500, %v496
  %v889 = vpack.c.b16 %v505, %v501
  %v890 = vpack.c.b16 %v506, %v502
  %v891 = vpack.c.b16 %v507, %v503
  %v892 = vpack.c.b16 %v508, %v504
  %v893 = vpack.c.b16 %v513, %v509
  %v894 = vpack.c.b16 %v514, %v510
  %v895 = vpack.c.b16 %v515, %v511
  %v896 = vpack.c.b16 %v516, %v512
  %v897 = vpack.c.b16 %v521, %v517
  %v898 = vpack.c.b16 %v522, %v518
  %v899 = vpack.c.b16 %v523, %v519
  %v900 = vpack.c.b16 %v524, %v520
  %v901 = vpack.c.b16 %v529, %v525
  %v902 = vpack.c.b16 %v530, %v526
  %v903 = vpack.c.b16 %v531, %v527
  %v904 = vpack.c.b16 %v532, %v528
  %v905 = vpack.c.b16 %v537, %v533
  %v906 = vpack.c.b16 %v538, %v534
  %v907 = vpack.c.b16 %v539, %v535
  %v908 = vpack.c.b16 %v540, %v536
  %v909 = vpack.c.b16 %v545, %v541
  %v910 = vpack.c.b16 %v546, %v542
  %v911 = vpack.c.b16 %v547, %v543
  %v912 = vpack.c.b16 %v548, %v544
  %v913 = vpack.c.b16 %v553, %v549
  %v914 = vpack.c.b16 %v554, %v550
  %v915 = vpack.c.b16 %v555, %v551
  %v916 = vpack.c.b16 %v556, %v552
  %v917 = vpack.c.b16 %v561, %v557
  %v918 = vpack.c.b16 %v562, %v558
  %v919 = vpack.c.b16 %v563, %v559
  %v920 = vpack.c.b16 %v564, %v560
  %v921 = vpack.c.b16 %v569, %v565
  %v922 = vpack.c.b16 %v570, %v566
  %v923 = vpack.c.b16 %v571, %v567
  %v924 = vpack.c.b16 %v572, %v568
  %v925 = vpack.c.b16 %v577, %v573
  %v926 = vpack.c.b16 %v578, %v574
  %v927 = vpack.c.b16 %v579, %v575
  %v928 = vpack.c.b16 %v580, %v576
  %v929 = vpack.c.b16 %v585, %v581
  %v930 = vpack.c.b16 %v586, %v582
  %v931 = vpack.c.b16 %v587, %v583
  %v932 = vpack.c.b16 %v588, %v584
  %v933 = vpack.c.b16 %v593, %v589
  %v934 = vpack.c.b16 %v594, %v590
  %v935 = vpack.c.b16 %v595, %v591
  %v936 = vpack.c.b16 %v596, %v592
  %v937 = vpack.c.b16 %v601, %v597
  %v938 = vpack.c.b16 %v602, %v598
  %v939 = vpack.c.b16 %v603, %v599
  %v940 = vpack.c.b16 %v604, %v600
  %v941 = vpack.c.b16 %v609, %v605
  %v942 = vpack.c.b16 %v610, %v606
  %v943 = vpack.c.b16 %v611, %v607
  %v944 = vpack.c.b16 %v612, %v608
  %v945 = vpack.c.b16 %v617, %v613
  %v946 = vpack.c.b16 %v618, %v614
  %v947 = vpack.c.b16 %v619, %v615
  %v948 = vpack.c.b16 %v620, %v616
  %v949 = vpack.c.b16 %v625, %v621
  %v950 = vpack.c.b16 %v626, %v622
  %v951 = vpack.c.b16 %v627, %v623
  %v952 = vpack.c.b16 %v628, %v624
  %v953 = vpack.c.b16 %v633, %v629
  %v954 = vpack.c.b16 %v634, %v630
  %v955 = vpack.c.b16 %v635, %v631
  %v956 = vpack.c.b16 %v636, %v632
  %v957 = vpack.c.b16 %v641, %v637
  %v958 = vpack.c.b16 %v642, %v638
  %v959 = vpack.c.b16 %v643, %v639
  %v960 = vpack.c.b16 %v644, %v640
  %v961 = vpack.c.b16 %v649, %v645
  %v962 = vpack.c.b16 %v650, %v646
  %v963 = vpack.c.b16 %v651, %v647
  %v964 = vpack.c.b16 %v652, %v648
  %v965 = vpack.c.b16 %v657, %v653
  %v966 = vpack.c.b16 %v658, %v654
  %v967 = vpack.c.b16 %v659, %v655
  %v968 = vpack.c.b16 %v660, %v656
  %v969 = vpack.c.b16 %v665, %v661
  %v970 = vpack.c.b16 %v666, %v662
  %v971 = vpack.c.b16 %v667, %v663
  %v972 = vpack.c.b16 %v668, %v664
  %v973 = vpack.c.b16 %v673, %v669
  %v974 = vpack.c.b16 %v674, %v670
  %v975 = vpack.c.b16 %v675, %v671
  %v976 = vpack.c.b16 %v676, %v672
  %v977 = vpack.c.b16 %v681, %v677
  %v978 = vpack.c.b16 %v682, %v678
  %v979 = vpack.c.b16 %v683, %v679
  %v980 = vpack.c.b16 %v684, %v680
  %v981 = vpack.c.b16 %v689, %v685
  %v982 = vpack.c.b16 %v690, %v686
  %v983 = vpack.c.b16 %v691, %v687
  %v984 = vpack.c.b16 %v692, %v688
  %v985 = vpack.c.b16 %v697, %v693
  %v986 = vpack.c.b16 %v698, %v694
  %v987 = vpack.c.b16 %v699, %v695
  %v988 = vpack.c.b16 %v700, %v696
  %v989 = vpack.c.b16 %v705, %v701
  %v990 = vpack.c.b16 %v706, %v702
  %v991 = vpack.c.b16 %v707, %v703
  %v992 = vpack.c.b16 %v708, %v704
  %v993 = vpack.c.b16 %v713, %v709
  %v994 = vpack.c.b16 %v714, %v710
  %v995 = vpack.c.b16 %v715, %v711
  %v996 = vpack.c.b16 %v716, %v712
  %v997 = vpack.c.b16 %v721, %v717
  %v998 = vpack.c.b16 %v722, %v718
  %v999 = vpack.c.b16 %v723, %v719
  %v1000 = vpack.c.b16 %v724, %v720
  %v1001 = vpack.c.b16 %v729, %v725
  %v1002 = vpack.c.b16 %v730, %v726
  %v1003 = vpack.c.b16 %v731, %v727
  %v1004 = vpack.c.b16 %v732, %v728
  %v1005 = vpack.c.b16 %v737, %v733
  %v1006 = vpack.c.b16 %v738, %v734
  %v1007 = vpack.c.b16 %v739, %v735
  %v1008 = vpack.c.b16 %v740, %v736
  %v1009 = vpack.c.b16 %v745, %v741
  %v1010 = vpack.c.b16 %v746, %v742
  %v1011 = vpack.c.b16 %v747, %v743
  %v1012 = vpack.c.b16 %v748, %v744
  %v1013 = vpack.c.b16 %v753, %v749
  %v1014 = vpack.c.b16 %v754, %v750
  %v1015 = vpack.c.b16 %v755, %v751
  %v1016 = vpack.c.b16 %v756, %v752
  %v1017 = vpack.c.b16 %v761, %v757
  %v1018 = vpack.c.b16 %v762, %v758
  %v1019 = vpack.c.b16 %v763, %v759
  %v1020 = vpack.c.b16 %v764, %v760
  %v1021 = vpack.c.b16 %v769, %v765
  %v1022 = vpack.c.b16 %v770, %v766
  %v1023 = vpack.c.b16 %v771, %v767
  %v1024 = vpack.c.b16 %v772, %v768
  %v1025 = vpack.c.b16 %v777, %v773
  %v1026 = vpack.c.b16 %v778, %v774
  %v1027 = vpack.c.b16 %v779, %v775
  %v1028 = vpack.c.b16 %v780, %v776
  %v1029 = vpack.c.b16 %v785, %v781
  %v1030 = vpack.c.b16 %v786, %v782
  %v1031 = vpack.c.b16 %v787, %v783
  %v1032 = vpack.c.b16 %v788, %v784
  %v1033 = vpack.c.b16 %v793, %v789
  %v1034 = vpack.c.b16 %v794, %v790
  %v1035 = vpack.c.b16 %v795, %v791
  %v1036 = vpack.c.b16 %v796, %v792
  %v1037 = vpack.c.b16 %v801, %v797
  %v1038 = vpack.c.b16 %v802, %v798
  %v1039 = vpack.c.b16 %v803, %v799
  %v1040 = vpack.c.b16 %v804, %v800
  %v1041 = vpack.c.b16 %v809, %v805
  %v1042 = vpack.c.b16 %v810, %v806
  %v1043 = vpack.c.b16 %v811, %v807
  %v1044 = vpack.c.b16 %v812, %v808
  %v1045 = vpack.c.b16 %v817, %v813
  %v1046 = vpack.c.b16 %v818, %v814
  %v1047 = vpack.c.b16 %v819, %v815
  %v1048 = vpack.c.b16 %v820, %v816
  %v1049 = vpack.c.b16 %v825, %v821
  %v1050 = vpack.c.b16 %v826, %v822
  %v1051 = vpack.c.b16 %v827, %v823
  %v1052 = vpack.c.b16 %v828, %v824
  %v1053 = vpack.c.b16 %v833, %v829
  %v1054 = vpack.c.b16 %v834, %v830
  %v1055 = vpack.c.b16 %v835, %v831
  %v1056 = vpack.c.b16 %v836, %v832
  %v1057 = vpack.c.b16 %v841, %v837
  %v1058 = vpack.c.b16 %v842, %v838
  %v1059 = vpack.c.b16 %v843, %v839
  %v1060 = vpack.c.b16 %v844, %v840
  %v1061 = vpack.c.b16 %v849, %v845
  %v1062 = vpack.c.b16 %v850, %v846
  %v1063 = vpack.c.b16 %v851, %v847
  %v1064 = vpack.c.b16 %v852, %v848
  %v1065 = vpack.c.b16 %v857, %v853
  %v1066 = vpack.c.b16 %v858, %v854
  %v1067 = vpack.c.b16 %v859, %v855
  %v1068 = vpack.c.b16 %v860, %v856
  %v1069 = vpack.c.b16 %v865, %v861
  %v1070 = vpack.c.b16 %v866, %v862
  %v1071 = vpack.c.b16 %v867, %v863
  %v1072 = vpack.c.b16 %v868, %v864
  %v1073 = vpack.c.b16 %v873, %v869
  %v1074 = vpack.c.b16 %v874, %v870
  %v1075 = vpack.c.b16 %v875, %v871
  %v1076 = vpack.c.b16 %v876, %v872
  %v1077 = vpack.c.b16 %v881, %v877
  %v1078 = vpack.c.b16 %v882, %v878
  %v1079 = vpack.c.b16 %v883, %v879
  %v1080 = vpack.c.b16 %v884, %v880
  %vm1277 = vcmask 130048
  %v1279 = vsel %vm1277, %v290, 0
  %1281 = vmatprep.subr.bf16.mxu0 %v886
  %1282 = vmatpush1.bf16.msra.mxu0 %v885
  %1283 = vmatprep.subr.bf16.mxu0 %v890
  %1284 = vmatpush1.bf16.msra.mxu0 %v889
  %1285 = vmatprep.subr.bf16.mxu0 %v894
  %1286 = vmatpush1.bf16.msra.mxu0 %v893
  %1287 = vmatprep.subr.bf16.mxu0 %v898
  %1288 = vmatpush1.bf16.msra.mxu0 %v897
  %1289 = vmatprep.subr.bf16.mxu0 %v902
  %1290 = vmatpush1.bf16.msra.mxu0 %v901
  %1291 = vmatprep.subr.bf16.mxu0 %v906
  %1292 = vmatpush1.bf16.msra.mxu0 %v905
  %1293 = vmatprep.subr.bf16.mxu0 %v910
  %1294 = vmatpush1.bf16.msra.mxu0 %v909
  %1295 = vmatprep.subr.bf16.mxu0 %v914
  %1296 = vmatpush1.bf16.msra.mxu0 %v913
  %1297 = vmatprep.subr.bf16.mxu0 %v918
  %1298 = vmatpush1.bf16.msra.mxu0 %v917
  %1299 = vmatprep.subr.bf16.mxu0 %v922
  %1300 = vmatpush1.bf16.msra.mxu0 %v921
  %1301 = vmatprep.subr.bf16.mxu0 %v926
  %1302 = vmatpush1.bf16.msra.mxu0 %v925
  %1303 = vmatprep.subr.bf16.mxu0 %v930
  %1304 = vmatpush1.bf16.msra.mxu0 %v929
  %1305 = vmatprep.subr.bf16.mxu0 %v934
  %1306 = vmatpush1.bf16.msra.mxu0 %v933
  %1307 = vmatprep.subr.bf16.mxu0 %v938
  %1308 = vmatpush1.bf16.msra.mxu0 %v937
  %1309 = vmatprep.subr.bf16.mxu0 %v942
  %1310 = vmatpush1.bf16.msra.mxu0 %v941
  %1311 = vmatprep.subr.bf16.mxu0 %v946
  %1312 = vmatpush1.bf16.msra.mxu0 %v945
  %1313 = vmatprep.mubr.bf16.mxu0 %v285
  %1314 = vmatmul.mubr.bf16.gmra.mrb[0].mxu0 %v284
  %v1315 = vpop.f32.mrb[0].mxu0
  %v1316 = vadd.f32 %v256, %v1315
  %v1317 = vpop.f32.mrb[0].mxu0
  %v1318 = vadd.f32 %v260, %v1317
  %v1319 = vpop.f32.mrb[0].mxu0
  %v1320 = vpop.f32.mrb[0].mxu0
  %1321 = vdwg.mxu0
  %1322 = vmatprep.subr.bf16.mxu0 %v950
  %1323 = vmatpush1.bf16.msra.mxu0 %v949
  %1324 = vmatprep.subr.bf16.mxu0 %v954
  %1325 = vmatpush1.bf16.msra.mxu0 %v953
  %1326 = vmatprep.subr.bf16.mxu0 %v958
  %1327 = vmatpush1.bf16.msra.mxu0 %v957
  %1328 = vmatprep.subr.bf16.mxu0 %v962
  %1329 = vmatpush1.bf16.msra.mxu0 %v961
  %1330 = vmatprep.subr.bf16.mxu0 %v966
  %1331 = vmatpush1.bf16.msra.mxu0 %v965
  %1332 = vmatprep.subr.bf16.mxu0 %v970
  %1333 = vmatpush1.bf16.msra.mxu0 %v969
  %1334 = vmatprep.subr.bf16.mxu0 %v974
  %1335 = vmatpush1.bf16.msra.mxu0 %v973
  %1336 = vmatprep.subr.bf16.mxu0 %v978
  %1337 = vmatpush1.bf16.msra.mxu0 %v977
  %1338 = vmatprep.subr.bf16.mxu0 %v982
  %1339 = vmatpush1.bf16.msra.mxu0 %v981
  %1340 = vmatprep.subr.bf16.mxu0 %v986
  %1341 = vmatpush1.bf16.msra.mxu0 %v985
  %1342 = vmatprep.subr.bf16.mxu0 %v990
  %1343 = vmatpush1.bf16.msra.mxu0 %v989
  %1344 = vmatprep.subr.bf16.mxu0 %v994
  %1345 = vmatpush1.bf16.msra.mxu0 %v993
  %1346 = vmatprep.subr.bf16.mxu0 %v998
  %1347 = vmatpush1.bf16.msra.mxu0 %v997
  %1348 = vmatprep.subr.bf16.mxu0 %v1002
  %1349 = vmatpush1.bf16.msra.mxu0 %v1001
  %1350 = vmatprep.subr.bf16.mxu0 %v1006
  %1351 = vmatpush1.bf16.msra.mxu0 %v1005
  %1352 = vmatprep.subr.bf16.mxu0 %v1010
  %1353 = vmatpush1.bf16.msra.mxu0 %v1009
  %1354 = vmatprep.mubr.bf16.mxu0 %v287
  %1355 = vmatmul.mubr.bf16.gmra.mrb[0].mxu0 %v286
  %v1356 = vpop.f32.mrb[0].mxu0
  %v1357 = vadd.f32 %v1316, %v1356
  %v1358 = vpop.f32.mrb[0].mxu0
  %v1359 = vadd.f32 %v1318, %v1358
  %v1360 = vpop.f32.mrb[0].mxu0
  %v1361 = vpop.f32.mrb[0].mxu0
  %1362 = vdwg.mxu0
  %1363 = vmatprep.subr.bf16.mxu0 %v1014
  %1364 = vmatpush1.bf16.msra.mxu0 %v1013
  %1365 = vmatprep.subr.bf16.mxu0 %v1018
  %1366 = vmatpush1.bf16.msra.mxu0 %v1017
  %1367 = vmatprep.subr.bf16.mxu0 %v1022
  %1368 = vmatpush1.bf16.msra.mxu0 %v1021
  %1369 = vmatprep.subr.bf16.mxu0 %v1026
  %1370 = vmatpush1.bf16.msra.mxu0 %v1025
  %1371 = vmatprep.subr.bf16.mxu0 %v1030
  %1372 = vmatpush1.bf16.msra.mxu0 %v1029
  %1373 = vmatprep.subr.bf16.mxu0 %v1034
  %1374 = vmatpush1.bf16.msra.mxu0 %v1033
  %1375 = vmatprep.subr.bf16.mxu0 %v1038
  %1376 = vmatpush1.bf16.msra.mxu0 %v1037
  %1377 = vmatprep.subr.bf16.mxu0 %v1042
  %1378 = vmatpush1.bf16.msra.mxu0 %v1041
  %1379 = vmatprep.subr.bf16.mxu0 %v1046
  %1380 = vmatpush1.bf16.msra.mxu0 %v1045
  %1381 = vmatprep.subr.bf16.mxu0 %v1050
  %1382 = vmatpush1.bf16.msra.mxu0 %v1049
  %1383 = vmatprep.subr.bf16.mxu0 %v1054
  %1384 = vmatpush1.bf16.msra.mxu0 %v1053
  %1385 = vmatprep.subr.bf16.mxu0 %v1058
  %1386 = vmatpush1.bf16.msra.mxu0 %v1057
  %1387 = vmatprep.subr.bf16.mxu0 %v1062
  %1388 = vmatpush1.bf16.msra.mxu0 %v1061
  %1389 = vmatprep.subr.bf16.mxu0 %v1066
  %1390 = vmatpush1.bf16.msra.mxu0 %v1065
  %1391 = vmatprep.subr.bf16.mxu0 %v1070
  %1392 = vmatpush1.bf16.msra.mxu0 %v1069
  %1393 = vmatprep.subr.bf16.mxu0 %v1074
  %1394 = vmatpush1.bf16.msra.mxu0 %v1073
  %1395 = vmatprep.mubr.bf16.mxu0 %v289
  %1396 = vmatmul.mubr.bf16.gmra.mrb[0].mxu0 %v288
  %v1397 = vpop.f32.mrb[0].mxu0
  %v1398 = vadd.f32 %v1357, %v1397
  %v1399 = vpop.f32.mrb[0].mxu0
  %v1400 = vadd.f32 %v1359, %v1399
  %v1401 = vpop.f32.mrb[0].mxu0
  %v1402 = vpop.f32.mrb[0].mxu0
  %1403 = vdwg.mxu0
  %1404 = vmatprep.subr.bf16.mxu0 %v1078
  %1405 = vmatpush1.bf16.msra.mxu0 %v1077
  %1406 = vmatprep.subr.bf16.mxu0 0
  %1407 = vmatpush1.bf16.msra.mxu0 0
  %1408 = vmatprep.subr.bf16.mxu0 0
  %1409 = vmatpush1.bf16.msra.mxu0 0
  %1410 = vmatprep.subr.bf16.mxu0 0
  %1411 = vmatpush1.bf16.msra.mxu0 0
  %1412 = vmatprep.subr.bf16.mxu0 0
  %1413 = vmatpush1.bf16.msra.mxu0 0
  %1414 = vmatprep.subr.bf16.mxu0 0
  %1415 = vmatpush1.bf16.msra.mxu0 0
  %1416 = vmatprep.subr.bf16.mxu0 0
  %1417 = vmatpush1.bf16.msra.mxu0 0
  %1418 = vmatprep.subr.bf16.mxu0 0
  %1419 = vmatpush1.bf16.msra.mxu0 0
  %1420 = vmatprep.subr.bf16.mxu0 0
  %1421 = vmatpush1.bf16.msra.mxu0 0
  %1422 = vmatprep.subr.bf16.mxu0 0
  %1423 = vmatpush1.bf16.msra.mxu0 0
  %1424 = vmatprep.subr.bf16.mxu0 0
  %1425 = vmatpush1.bf16.msra.mxu0 0
  %1426 = vmatprep.subr.bf16.mxu0 0
  %1427 = vmatpush1.bf16.msra.mxu0 0
  %1428 = vmatprep.subr.bf16.mxu0 0
  %1429 = vmatpush1.bf16.msra.mxu0 0
  %1430 = vmatprep.subr.bf16.mxu0 0
  %1431 = vmatpush1.bf16.msra.mxu0 0
  %1432 = vmatprep.subr.bf16.mxu0 0
  %1433 = vmatpush1.bf16.msra.mxu0 0
  %1434 = vmatprep.subr.bf16.mxu0 0
  %1435 = vmatpush1.bf16.msra.mxu0 0
  %1436 = vmatprep.mubr.bf16.mxu0 0
  %1437 = vmatmul.mubr.bf16.gmra.mrb[0].mxu0 %v1279
  %v1438 = vpop.f32.mrb[0].mxu0
  %v1439 = vadd.f32 %v1398, %v1438
  %v1440 = vpop.f32.mrb[0].mxu0
  %v1441 = vadd.f32 %v1400, %v1440
  %v1442 = vpop.f32.mrb[0].mxu0
  %v1443 = vpop.f32.mrb[0].mxu0
  %1444 = vdwg.mxu0
  %1445 = vmatprep.subr.bf16.mxu0 %v888
  %1446 = vmatpush1.bf16.msra.mxu0 %v887
  %1447 = vmatprep.subr.bf16.mxu0 %v892
  %1448 = vmatpush1.bf16.msra.mxu0 %v891
  %1449 = vmatprep.subr.bf16.mxu0 %v896
  %1450 = vmatpush1.bf16.msra.mxu0 %v895
  %1451 = vmatprep.subr.bf16.mxu0 %v900
  %1452 = vmatpush1.bf16.msra.mxu0 %v899
  %1453 = vmatprep.subr.bf16.mxu0 %v904
  %1454 = vmatpush1.bf16.msra.mxu0 %v903
  %1455 = vmatprep.subr.bf16.mxu0 %v908
  %1456 = vmatpush1.bf16.msra.mxu0 %v907
  %1457 = vmatprep.subr.bf16.mxu0 %v912
  %1458 = vmatpush1.bf16.msra.mxu0 %v911
  %1459 = vmatprep.subr.bf16.mxu0 %v916
  %1460 = vmatpush1.bf16.msra.mxu0 %v915
  %1461 = vmatprep.subr.bf16.mxu0 %v920
  %1462 = vmatpush1.bf16.msra.mxu0 %v919
  %1463 = vmatprep.subr.bf16.mxu0 %v924
  %1464 = vmatpush1.bf16.msra.mxu0 %v923
  %1465 = vmatprep.subr.bf16.mxu0 %v928
  %1466 = vmatpush1.bf16.msra.mxu0 %v927
  %1467 = vmatprep.subr.bf16.mxu0 %v932
  %1468 = vmatpush1.bf16.msra.mxu0 %v931
  %1469 = vmatprep.subr.bf16.mxu0 %v936
  %1470 = vmatpush1.bf16.msra.mxu0 %v935
  %1471 = vmatprep.subr.bf16.mxu0 %v940
  %1472 = vmatpush1.bf16.msra.mxu0 %v939
  %1473 = vmatprep.subr.bf16.mxu0 %v944
  %1474 = vmatpush1.bf16.msra.mxu0 %v943
  %1475 = vmatprep.subr.bf16.mxu0 %v948
  %1476 = vmatpush1.bf16.msra.mxu0 %v947
  %1477 = vmatprep.mubr.bf16.mxu0 %v285
  %1478 = vmatmul.mubr.bf16.gmra.mrb[0].mxu0 %v284
  %v1479 = vpop.f32.mrb[0].mxu0
  %v1480 = vadd.f32 %v264, %v1479
  %v1481 = vpop.f32.mrb[0].mxu0
  %v1482 = vadd.f32 %v268, %v1481
  %v1483 = vpop.f32.mrb[0].mxu0
  %v1484 = vpop.f32.mrb[0].mxu0
  %1485 = vdwg.mxu0
  %1486 = vmatprep.subr.bf16.mxu0 %v952
  %1487 = vmatpush1.bf16.msra.mxu0 %v951
  %1488 = vmatprep.subr.bf16.mxu0 %v956
  %1489 = vmatpush1.bf16.msra.mxu0 %v955
  %1490 = vmatprep.subr.bf16.mxu0 %v960
  %1491 = vmatpush1.bf16.msra.mxu0 %v959
  %1492 = vmatprep.subr.bf16.mxu0 %v964
  %1493 = vmatpush1.bf16.msra.mxu0 %v963
  %1494 = vmatprep.subr.bf16.mxu0 %v968
  %1495 = vmatpush1.bf16.msra.mxu0 %v967
  %1496 = vmatprep.subr.bf16.mxu0 %v972
  %1497 = vmatpush1.bf16.msra.mxu0 %v971
  %1498 = vmatprep.subr.bf16.mxu0 %v976
  %1499 = vmatpush1.bf16.msra.mxu0 %v975
  %1500 = vmatprep.subr.bf16.mxu0 %v980
  %1501 = vmatpush1.bf16.msra.mxu0 %v979
  %1502 = vmatprep.subr.bf16.mxu0 %v984
  %1503 = vmatpush1.bf16.msra.mxu0 %v983
  %1504 = vmatprep.subr.bf16.mxu0 %v988
  %1505 = vmatpush1.bf16.msra.mxu0 %v987
  %1506 = vmatprep.subr.bf16.mxu0 %v992
  %1507 = vmatpush1.bf16.msra.mxu0 %v991
  %1508 = vmatprep.subr.bf16.mxu0 %v996
  %1509 = vmatpush1.bf16.msra.mxu0 %v995
  %1510 = vmatprep.subr.bf16.mxu0 %v1000
  %1511 = vmatpush1.bf16.msra.mxu0 %v999
  %1512 = vmatprep.subr.bf16.mxu0 %v1004
  %1513 = vmatpush1.bf16.msra.mxu0 %v1003
  %1514 = vmatprep.subr.bf16.mxu0 %v1008
  %1515 = vmatpush1.bf16.msra.mxu0 %v1007
  %1516 = vmatprep.subr.bf16.mxu0 %v1012
  %1517 = vmatpush1.bf16.msra.mxu0 %v1011
  %1518 = vmatprep.mubr.bf16.mxu0 %v287
  %1519 = vmatmul.mubr.bf16.gmra.mrb[0].mxu0 %v286
  %v1520 = vpop.f32.mrb[0].mxu0
  %v1521 = vadd.f32 %v1480, %v1520
  %v1522 = vpop.f32.mrb[0].mxu0
  %v1523 = vadd.f32 %v1482, %v1522
  %v1524 = vpop.f32.mrb[0].mxu0
  %v1525 = vpop.f32.mrb[0].mxu0
  %1526 = vdwg.mxu0
  %1527 = vmatprep.subr.bf16.mxu0 %v1016
  %1528 = vmatpush1.bf16.msra.mxu0 %v1015
  %1529 = vmatprep.subr.bf16.mxu0 %v1020
  %1530 = vmatpush1.bf16.msra.mxu0 %v1019
  %1531 = vmatprep.subr.bf16.mxu0 %v1024
  %1532 = vmatpush1.bf16.msra.mxu0 %v1023
  %1533 = vmatprep.subr.bf16.mxu0 %v1028
  %1534 = vmatpush1.bf16.msra.mxu0 %v1027
  %1535 = vmatprep.subr.bf16.mxu0 %v1032
  %1536 = vmatpush1.bf16.msra.mxu0 %v1031
  %1537 = vmatprep.subr.bf16.mxu0 %v1036
  %1538 = vmatpush1.bf16.msra.mxu0 %v1035
  %1539 = vmatprep.subr.bf16.mxu0 %v1040
  %1540 = vmatpush1.bf16.msra.mxu0 %v1039
  %1541 = vmatprep.subr.bf16.mxu0 %v1044
  %1542 = vmatpush1.bf16.msra.mxu0 %v1043
  %1543 = vmatprep.subr.bf16.mxu0 %v1048
  %1544 = vmatpush1.bf16.msra.mxu0 %v1047
  %1545 = vmatprep.subr.bf16.mxu0 %v1052
  %1546 = vmatpush1.bf16.msra.mxu0 %v1051
  %1547 = vmatprep.subr.bf16.mxu0 %v1056
  %1548 = vmatpush1.bf16.msra.mxu0 %v1055
  %1549 = vmatprep.subr.bf16.mxu0 %v1060
  %1550 = vmatpush1.bf16.msra.mxu0 %v1059
  %1551 = vmatprep.subr.bf16.mxu0 %v1064
  %1552 = vmatpush1.bf16.msra.mxu0 %v1063
  %1553 = vmatprep.subr.bf16.mxu0 %v1068
  %1554 = vmatpush1.bf16.msra.mxu0 %v1067
  %1555 = vmatprep.subr.bf16.mxu0 %v1072
  %1556 = vmatpush1.bf16.msra.mxu0 %v1071
  %1557 = vmatprep.subr.bf16.mxu0 %v1076
  %1558 = vmatpush1.bf16.msra.mxu0 %v1075
  %1559 = vmatprep.mubr.bf16.mxu0 %v289
  %1560 = vmatmul.mubr.bf16.gmra.mrb[0].mxu0 %v288
  %v1561 = vpop.f32.mrb[0].mxu0
  %v1562 = vadd.f32 %v1521, %v1561
  %v1563 = vpop.f32.mrb[0].mxu0
  %v1564 = vadd.f32 %v1523, %v1563
  %v1565 = vpop.f32.mrb[0].mxu0
  %v1566 = vpop.f32.mrb[0].mxu0
  %1567 = vdwg.mxu0
  %1568 = vmatprep.subr.bf16.mxu0 %v1080
  %1569 = vmatpush1.bf16.msra.mxu0 %v1079
  %1570 = vmatprep.subr.bf16.mxu0 0
  %1571 = vmatpush1.bf16.msra.mxu0 0
  %1572 = vmatprep.subr.bf16.mxu0 0
  %1573 = vmatpush1.bf16.msra.mxu0 0
  %1574 = vmatprep.subr.bf16.mxu0 0
  %1575 = vmatpush1.bf16.msra.mxu0 0
  %1576 = vmatprep.subr.bf16.mxu0 0
  %1577 = vmatpush1.bf16.msra.mxu0 0
  %1578 = vmatprep.subr.bf16.mxu0 0
  %1579 = vmatpush1.bf16.msra.mxu0 0
  %1580 = vmatprep.subr.bf16.mxu0 0
  %1581 = vmatpush1.bf16.msra.mxu0 0
  %1582 = vmatprep.subr.bf16.mxu0 0
  %1583 = vmatpush1.bf16.msra.mxu0 0
  %1584 = vmatprep.subr.bf16.mxu0 0
  %1585 = vmatpush1.bf16.msra.mxu0 0
  %1586 = vmatprep.subr.bf16.mxu0 0
  %1587 = vmatpush1.bf16.msra.mxu0 0
  %1588 = vmatprep.subr.bf16.mxu0 0
  %1589 = vmatpush1.bf16.msra.mxu0 0
  %1590 = vmatprep.subr.bf16.mxu0 0
  %1591 = vmatpush1.bf16.msra.mxu0 0
  %1592 = vmatprep.subr.bf16.mxu0 0
  %1593 = vmatpush1.bf16.msra.mxu0 0
  %1594 = vmatprep.subr.bf16.mxu0 0
  %1595 = vmatpush1.bf16.msra.mxu0 0
  %1596 = vmatprep.subr.bf16.mxu0 0
  %1597 = vmatpush1.bf16.msra.mxu0 0
  %1598 = vmatprep.subr.bf16.mxu0 0
  %1599 = vmatpush1.bf16.msra.mxu0 0
  %1600 = vmatprep.mubr.bf16.mxu0 0
  %1601 = vmatmul.mubr.bf16.gmra.mrb[0].mxu0 %v1279
  %v1602 = vpop.f32.mrb[0].mxu0
  %v1603 = vadd.f32 %v1562, %v1602
  %v1604 = vpop.f32.mrb[0].mxu0
  %v1605 = vadd.f32 %v1564, %v1604
  %v1606 = vpop.f32.mrb[0].mxu0
  %v1607 = vpop.f32.mrb[0].mxu0
  %1608 = vdwg.mxu0
  %v1609 = vmax.f32 %v1439, 0.0
  %v1610 = vmax.f32 %v1441, 0.0
  %v1611 = vmax.f32 %v1603, 0.0
  %v1612 = vmax.f32 %v1605, 0.0
  %v1613 = vld [vmem:[%s3] sm:$0xf]
  %v1615 = vlaneseq
  %v1616 = vshrl.u32 %v1615, 7
  %v1617 = vsub.s32 0, %v1616
  %v1618 = vrot.slane %v1613, %v1617
  %v1619 = vlaneseq
  %v1620 = vshrl.u32 %v1619, 7
  %v1621 = vsub.s32 1, %v1620
  %v1622 = vrot.slane %v1613, %v1621
  %v1623 = vlaneseq
  %v1624 = vshrl.u32 %v1623, 7
  %v1625 = vsub.s32 2, %v1624
  %v1626 = vrot.slane %v1613, %v1625
  %v1627 = vlaneseq
  %v1628 = vshrl.u32 %v1627, 7
  %v1629 = vsub.s32 3, %v1628
  %v1630 = vrot.slane %v1613, %v1629
  %v1635 = vmul.f32 %v1609, %v1618
  %v1636 = vmul.f32 %v1610, %v1622
  %v1637 = vmul.f32 %v1611, %v1626
  %v1638 = vmul.f32 %v1612, %v1630
  %v1639 = vld [vmem:[%s4] sm:$0xf]
  %v1641 = vlaneseq
  %v1642 = vshrl.u32 %v1641, 7
  %v1643 = vsub.s32 0, %v1642
  %v1644 = vrot.slane %v1639, %v1643
  %v1645 = vlaneseq
  %v1646 = vshrl.u32 %v1645, 7
  %v1647 = vsub.s32 1, %v1646
  %v1648 = vrot.slane %v1639, %v1647
  %v1649 = vlaneseq
  %v1650 = vshrl.u32 %v1649, 7
  %v1651 = vsub.s32 2, %v1650
  %v1652 = vrot.slane %v1639, %v1651
  %v1653 = vlaneseq
  %v1654 = vshrl.u32 %v1653, 7
  %v1655 = vsub.s32 3, %v1654
  %v1656 = vrot.slane %v1639, %v1655
  %v1661 = vadd.f32 %v1635, %v1644
  %v1662 = vadd.f32 %v1636, %v1648
  %v1663 = vadd.f32 %v1637, %v1652
  %v1664 = vadd.f32 %v1638, %v1656
  %v1665 = vpack.c.bf16 %v1661, %v1661
  %v1666 = vpack.c.bf16 %v1662, %v1662
  %v1667 = vpack.c.bf16 %v1663, %v1663
  %v1668 = vpack.c.bf16 %v1664, %v1664
  %v1669 = vld [vmem:[%s5] sm:$0xff]
  %v1670 = vld [vmem:[%s5 + $0x8] sm:$0xff]
  %v1671 = vld [vmem:[%s5 + $0x10] sm:$0xff]
  %v1672 = vld [vmem:[%s5 + $0x18] sm:$0xff]
  %v1673 = vld [vmem:[%s5 + $0x20] sm:$0xff]
  %v1674 = vld [vmem:[%s5 + $0x28] sm:$0xff]
  %v1675 = vld [vmem:[%s5 + $0x30] sm:$0xff]
  %v1676 = vld [vmem:[%s5 + $0x38] sm:$0xff]
  %v1677 = vld [vmem:[%s5 + $0x40] sm:$0xff]
  %v1678 = vld [vmem:[%s5 + $0x48] sm:$0xff]
  %v1679 = vld [vmem:[%s5 + $0x50] sm:$0xff]
  %v1680 = vld [vmem:[%s5 + $0x58] sm:$0xff]
  %v1681 = vld [vmem:[%s5 + $0x60] sm:$0xff]
  %v1682 = vld [vmem:[%s5 + $0x68] sm:$0xff]
  %v1683 = vld [vmem:[%s5 + $0x70] sm:$0xff]
  %v1684 = vld [vmem:[%s5 + $0x78] sm:$0xff]
  %v1685 = vld [vmem:[%s5 + $0x80] sm:$0xff]
  %v1686 = vld [vmem:[%s5 + $0x88] sm:$0xff]
  %v1687 = vld [vmem:[%s5 + $0x90] sm:$0xff]
  %v1688 = vld [vmem:[%s5 + $0x98] sm:$0xff]
  %v1689 = vld [vmem:[%s5 + $0xa0] sm:$0xff]
  %v1690 = vld [vmem:[%s5 + $0xa8] sm:$0xff]
  %v1691 = vld [vmem:[%s5 + $0xb0] sm:$0xff]
  %v1692 = vld [vmem:[%s5 + $0xb8] sm:$0xff]
  %v1693 = vld [vmem:[%s5 + $0xc0] sm:$0xff]
  %v1694 = vld [vmem:[%s5 + $0xc8] sm:$0xff]
  %v1695 = vld [vmem:[%s5 + $0xd0] sm:$0xff]
  %v1696 = vld [vmem:[%s5 + $0xd8] sm:$0xff]
  %v1697 = vld [vmem:[%s5 + $0xe0] sm:$0xff]
  %v1698 = vld [vmem:[%s5 + $0xe8] sm:$0xff]
  %v1699 = vld [vmem:[%s5 + $0xf0] sm:$0xff]
  %v1700 = vld [vmem:[%s5 + $0xf8] sm:$0xff]
  %v1701 = vld [vmem:[%s5 + $0x100] sm:$0xff]
  %v1702 = vld [vmem:[%s5 + $0x108] sm:$0xff]
  %v1703 = vld [vmem:[%s5 + $0x110] sm:$0xff]
  %v1704 = vld [vmem:[%s5 + $0x118] sm:$0xff]
  %v1705 = vld [vmem:[%s5 + $0x120] sm:$0xff]
  %v1706 = vld [vmem:[%s5 + $0x128] sm:$0xff]
  %v1707 = vld [vmem:[%s5 + $0x130] sm:$0xff]
  %v1708 = vld [vmem:[%s5 + $0x138] sm:$0xff]
  %v1709 = vld [vmem:[%s5 + $0x140] sm:$0xff]
  %v1710 = vld [vmem:[%s5 + $0x148] sm:$0xff]
  %v1711 = vld [vmem:[%s5 + $0x150] sm:$0xff]
  %v1712 = vld [vmem:[%s5 + $0x158] sm:$0xff]
  %v1713 = vld [vmem:[%s5 + $0x160] sm:$0xff]
  %v1714 = vld [vmem:[%s5 + $0x168] sm:$0xff]
  %v1715 = vld [vmem:[%s5 + $0x170] sm:$0xff]
  %v1716 = vld [vmem:[%s5 + $0x178] sm:$0xff]
  %v1717 = vld [vmem:[%s5 + $0x180] sm:$0xff]
  %v1718 = vld [vmem:[%s5 + $0x188] sm:$0xff]
  %v1719 = vld [vmem:[%s5 + $0x190] sm:$0xff]
  %v1720 = vld [vmem:[%s5 + $0x198] sm:$0xff]
  %v1721 = vld [vmem:[%s5 + $0x1a0] sm:$0xff]
  %v1722 = vld [vmem:[%s5 + $0x1a8] sm:$0xff]
  %v1723 = vld [vmem:[%s5 + $0x1b0] sm:$0xff]
  %v1724 = vld [vmem:[%s5 + $0x1b8] sm:$0xff]
  %v1725 = vld [vmem:[%s5 + $0x1c0] sm:$0xff]
  %v1726 = vld [vmem:[%s5 + $0x1c8] sm:$0xff]
  %v1727 = vld [vmem:[%s5 + $0x1d0] sm:$0xff]
  %v1728 = vld [vmem:[%s5 + $0x1d8] sm:$0xff]
  %v1729 = vld [vmem:[%s5 + $0x1e0] sm:$0xff]
  %v1730 = vld [vmem:[%s5 + $0x1e8] sm:$0xff]
  %v1731 = vld [vmem:[%s5 + $0x1f0] sm:$0xff]
  %v1732 = vld [vmem:[%s5 + $0x1f8] sm:$0xff]
  %v1733 = vld [vmem:[%s6] sm:$0x3]
  %v1735 = vlaneseq
  %v1736 = vshrl.u32 %v1735, 7
  %v1737 = vsub.s32 0, %v1736
  %v1738 = vrot.slane %v1733, %v1737
  %v1739 = vlaneseq
  %v1740 = vshrl.u32 %v1739, 7
  %v1741 = vsub.s32 1, %v1740
  %v1742 = vrot.slane %v1733, %v1741
  %v1809 = vunpack.c.l.b16 %v1669
  %v1810 = vunpack.c.h.b16 %v1669
  %v1811 = vunpack.c.l.b16 %v1670
  %v1812 = vunpack.c.h.b16 %v1670
  %v1813 = vunpack.c.l.b16 %v1671
  %v1814 = vunpack.c.h.b16 %v1671
  %v1815 = vunpack.c.l.b16 %v1672
  %v1816 = vunpack.c.h.b16 %v1672
  %v1817 = vunpack.c.l.b16 %v1673
  %v1818 = vunpack.c.h.b16 %v1673
  %v1819 = vunpack.c.l.b16 %v1674
  %v1820 = vunpack.c.h.b16 %v1674
  %v1821 = vunpack.c.l.b16 %v1675
  %v1822 = vunpack.c.h.b16 %v1675
  %v1823 = vunpack.c.l.b16 %v1676
  %v1824 = vunpack.c.h.b16 %v1676
  %v1825 = vunpack.c.l.b16 %v1677
  %v1826 = vunpack.c.h.b16 %v1677
  %v1827 = vunpack.c.l.b16 %v1678
  %v1828 = vunpack.c.h.b16 %v1678
  %v1829 = vunpack.c.l.b16 %v1679
  %v1830 = vunpack.c.h.b16 %v1679
  %v1831 = vunpack.c.l.b16 %v1680
  %v1832 = vunpack.c.h.b16 %v1680
  %v1833 = vunpack.c.l.b16 %v1681
  %v1834 = vunpack.c.h.b16 %v1681
  %v1835 = vunpack.c.l.b16 %v1682
  %v1836 = vunpack.c.h.b16 %v1682
  %v1837 = vunpack.c.l.b16 %v1683
  %v1838 = vunpack.c.h.b16 %v1683
  %v1839 = vunpack.c.l.b16 %v1684
  %v1840 = vunpack.c.h.b16 %v1684
  %v1841 = vunpack.c.l.b16 %v1685
  %v1842 = vunpack.c.h.b16 %v1685
  %v1843 = vunpack.c.l.b16 %v1686
  %v1844 = vunpack.c.h.b16 %v1686
  %v1845 = vunpack.c.l.b16 %v1687
  %v1846 = vunpack.c.h.b16 %v1687
  %v1847 = vunpack.c.l.b16 %v1688
  %v1848 = vunpack.c.h.b16 %v1688
  %v1849 = vunpack.c.l.b16 %v1689
  %v1850 = vunpack.c.h.b16 %v1689
  %v1851 = vunpack.c.l.b16 %v1690
  %v1852 = vunpack.c.h.b16 %v1690
  %v1853 = vunpack.c.l.b16 %v1691
  %v1854 = vunpack.c.h.b16 %v1691
  %v1855 = vunpack.c.l.b16 %v1692
  %v1856 = vunpack.c.h.b16 %v1692
  %v1857 = vunpack.c.l.b16 %v1693
  %v1858 = vunpack.c.h.b16 %v1693
  %v1859 = vunpack.c.l.b16 %v1694
  %v1860 = vunpack.c.h.b16 %v1694
  %v1861 = vunpack.c.l.b16 %v1695
  %v1862 = vunpack.c.h.b16 %v1695
  %v1863 = vunpack.c.l.b16 %v1696
  %v1864 = vunpack.c.h.b16 %v1696
  %v1865 = vunpack.c.l.b16 %v1697
  %v1866 = vunpack.c.h.b16 %v1697
  %v1867 = vunpack.c.l.b16 %v1698
  %v1868 = vunpack.c.h.b16 %v1698
  %v1869 = vunpack.c.l.b16 %v1699
  %v1870 = vunpack.c.h.b16 %v1699
  %v1871 = vunpack.c.l.b16 %v1700
  %v1872 = vunpack.c.h.b16 %v1700
  %v1873 = vunpack.c.l.b16 %v1701
  %v1874 = vunpack.c.h.b16 %v1701
  %v1875 = vunpack.c.l.b16 %v1702
  %v1876 = vunpack.c.h.b16 %v1702
  %v1877 = vunpack.c.l.b16 %v1703
  %v1878 = vunpack.c.h.b16 %v1703
  %v1879 = vunpack.c.l.b16 %v1704
  %v1880 = vunpack.c.h.b16 %v1704
  %v1881 = vunpack.c.l.b16 %v1705
  %v1882 = vunpack.c.h.b16 %v1705
  %v1883 = vunpack.c.l.b16 %v1706
  %v1884 = vunpack.c.h.b16 %v1706
  %v1885 = vunpack.c.l.b16 %v1707
  %v1886 = vunpack.c.h.b16 %v1707
  %v1887 = vunpack.c.l.b16 %v1708
  %v1888 = vunpack.c.h.b16 %v1708
  %v1889 = vunpack.c.l.b16 %v1709
  %v1890 = vunpack.c.h.b16 %v1709
  %v1891 = vunpack.c.l.b16 %v1710
  %v1892 = vunpack.c.h.b16 %v1710
  %v1893 = vunpack.c.l.b16 %v1711
  %v1894 = vunpack.c.h.b16 %v1711
  %v1895 = vunpack.c.l.b16 %v1712
  %v1896 = vunpack.c.h.b16 %v1712
  %v1897 = vunpack.c.l.b16 %v1713
  %v1898 = vunpack.c.h.b16 %v1713
  %v1899 = vunpack.c.l.b16 %v1714
  %v1900 = vunpack.c.h.b16 %v1714
  %v1901 = vunpack.c.l.b16 %v1715
  %v1902 = vunpack.c.h.b16 %v1715
  %v1903 = vunpack.c.l.b16 %v1716
  %v1904 = vunpack.c.h.b16 %v1716
  %v1905 = vunpack.c.l.b16 %v1717
  %v1906 = vunpack.c.h.b16 %v1717
  %v1907 = vunpack.c.l.b16 %v1718
  %v1908 = vunpack.c.h.b16 %v1718
  %v1909 = vunpack.c.l.b16 %v1719
  %v1910 = vunpack.c.h.b16 %v1719
  %v1911 = vunpack.c.l.b16 %v1720
  %v1912 = vunpack.c.h.b16 %v1720
  %v1913 = vunpack.c.l.b16 %v1721
  %v1914 = vunpack.c.h.b16 %v1721
  %v1915 = vunpack.c.l.b16 %v1722
  %v1916 = vunpack.c.h.b16 %v1722
  %v1917 = vunpack.c.l.b16 %v1723
  %v1918 = vunpack.c.h.b16 %v1723
  %v1919 = vunpack.c.l.b16 %v1724
  %v1920 = vunpack.c.h.b16 %v1724
  %v1921 = vunpack.c.l.b16 %v1725
  %v1922 = vunpack.c.h.b16 %v1725
  %v1923 = vunpack.c.l.b16 %v1726
  %v1924 = vunpack.c.h.b16 %v1726
  %v1925 = vunpack.c.l.b16 %v1727
  %v1926 = vunpack.c.h.b16 %v1727
  %v1927 = vunpack.c.l.b16 %v1728
  %v1928 = vunpack.c.h.b16 %v1728
  %v1929 = vunpack.c.l.b16 %v1729
  %v1930 = vunpack.c.h.b16 %v1729
  %v1931 = vunpack.c.l.b16 %v1730
  %v1932 = vunpack.c.h.b16 %v1730
  %v1933 = vunpack.c.l.b16 %v1731
  %v1934 = vunpack.c.h.b16 %v1731
  %v1935 = vunpack.c.l.b16 %v1732
  %v1936 = vunpack.c.h.b16 %v1732
  %v1937 = vpack.c.b16 %v1811, %v1809
  %v1938 = vpack.c.b16 %v1812, %v1810
  %v1939 = vpack.c.b16 %v1815, %v1813
  %v1940 = vpack.c.b16 %v1816, %v1814
  %v1941 = vpack.c.b16 %v1819, %v1817
  %v1942 = vpack.c.b16 %v1820, %v1818
  %v1943 = vpack.c.b16 %v1823, %v1821
  %v1944 = vpack.c.b16 %v1824, %v1822
  %v1945 = vpack.c.b16 %v1827, %v1825
  %v1946 = vpack.c.b16 %v1828, %v1826
  %v1947 = vpack.c.b16 %v1831, %v1829
  %v1948 = vpack.c.b16 %v1832, %v1830
  %v1949 = vpack.c.b16 %v1835, %v1833
  %v1950 = vpack.c.b16 %v1836, %v1834
  %v1951 = vpack.c.b16 %v1839, %v1837
  %v1952 = vpack.c.b16 %v1840, %v1838
  %v1953 = vpack.c.b16 %v1843, %v1841
  %v1954 = vpack.c.b16 %v1844, %v1842
  %v1955 = vpack.c.b16 %v1847, %v1845
  %v1956 = vpack.c.b16 %v1848, %v1846
  %v1957 = vpack.c.b16 %v1851, %v1849
  %v1958 = vpack.c.b16 %v1852, %v1850
  %v1959 = vpack.c.b16 %v1855, %v1853
  %v1960 = vpack.c.b16 %v1856, %v1854
  %v1961 = vpack.c.b16 %v1859, %v1857
  %v1962 = vpack.c.b16 %v1860, %v1858
  %v1963 = vpack.c.b16 %v1863, %v1861
  %v1964 = vpack.c.b16 %v1864, %v1862
  %v1965 = vpack.c.b16 %v1867, %v1865
  %v1966 = vpack.c.b16 %v1868, %v1866
  %v1967 = vpack.c.b16 %v1871, %v1869
  %v1968 = vpack.c.b16 %v1872, %v1870
  %v1969 = vpack.c.b16 %v1875, %v1873
  %v1970 = vpack.c.b16 %v1876, %v1874
  %v1971 = vpack.c.b16 %v1879, %v1877
  %v1972 = vpack.c.b16 %v1880, %v1878
  %v1973 = vpack.c.b16 %v1883, %v1881
  %v1974 = vpack.c.b16 %v1884, %v1882
  %v1975 = vpack.c.b16 %v1887, %v1885
  %v1976 = vpack.c.b16 %v1888, %v1886
  %v1977 = vpack.c.b16 %v1891, %v1889
  %v1978 = vpack.c.b16 %v1892, %v1890
  %v1979 = vpack.c.b16 %v1895, %v1893
  %v1980 = vpack.c.b16 %v1896, %v1894
  %v1981 = vpack.c.b16 %v1899, %v1897
  %v1982 = vpack.c.b16 %v1900, %v1898
  %v1983 = vpack.c.b16 %v1903, %v1901
  %v1984 = vpack.c.b16 %v1904, %v1902
  %v1985 = vpack.c.b16 %v1907, %v1905
  %v1986 = vpack.c.b16 %v1908, %v1906
  %v1987 = vpack.c.b16 %v1911, %v1909
  %v1988 = vpack.c.b16 %v1912, %v1910
  %v1989 = vpack.c.b16 %v1915, %v1913
  %v1990 = vpack.c.b16 %v1916, %v1914
  %v1991 = vpack.c.b16 %v1919, %v1917
  %v1992 = vpack.c.b16 %v1920, %v1918
  %v1993 = vpack.c.b16 %v1923, %v1921
  %v1994 = vpack.c.b16 %v1924, %v1922
  %v1995 = vpack.c.b16 %v1927, %v1925
  %v1996 = vpack.c.b16 %v1928, %v1926
  %v1997 = vpack.c.b16 %v1931, %v1929
  %v1998 = vpack.c.b16 %v1932, %v1930
  %v1999 = vpack.c.b16 %v1935, %v1933
  %v2000 = vpack.c.b16 %v1936, %v1934
  %2065 = vmatprep.subr.bf16.mxu0 %v1938
  %2066 = vmatpush1.bf16.msra.mxu0 %v1937
  %2067 = vmatprep.subr.bf16.mxu0 %v1940
  %2068 = vmatpush1.bf16.msra.mxu0 %v1939
  %2069 = vmatprep.subr.bf16.mxu0 %v1942
  %2070 = vmatpush1.bf16.msra.mxu0 %v1941
  %2071 = vmatprep.subr.bf16.mxu0 %v1944
  %2072 = vmatpush1.bf16.msra.mxu0 %v1943
  %2073 = vmatprep.subr.bf16.mxu0 %v1946
  %2074 = vmatpush1.bf16.msra.mxu0 %v1945
  %2075 = vmatprep.subr.bf16.mxu0 %v1948
  %2076 = vmatpush1.bf16.msra.mxu0 %v1947
  %2077 = vmatprep.subr.bf16.mxu0 %v1950
  %2078 = vmatpush1.bf16.msra.mxu0 %v1949
  %2079 = vmatprep.subr.bf16.mxu0 %v1952
  %2080 = vmatpush1.bf16.msra.mxu0 %v1951
  %2081 = vmatprep.subr.bf16.mxu0 %v1954
  %2082 = vmatpush1.bf16.msra.mxu0 %v1953
  %2083 = vmatprep.subr.bf16.mxu0 %v1956
  %2084 = vmatpush1.bf16.msra.mxu0 %v1955
  %2085 = vmatprep.subr.bf16.mxu0 %v1958
  %2086 = vmatpush1.bf16.msra.mxu0 %v1957
  %2087 = vmatprep.subr.bf16.mxu0 %v1960
  %2088 = vmatpush1.bf16.msra.mxu0 %v1959
  %2089 = vmatprep.subr.bf16.mxu0 %v1962
  %2090 = vmatpush1.bf16.msra.mxu0 %v1961
  %2091 = vmatprep.subr.bf16.mxu0 %v1964
  %2092 = vmatpush1.bf16.msra.mxu0 %v1963
  %2093 = vmatprep.subr.bf16.mxu0 %v1966
  %2094 = vmatpush1.bf16.msra.mxu0 %v1965
  %2095 = vmatprep.subr.bf16.mxu0 %v1968
  %2096 = vmatpush1.bf16.msra.mxu0 %v1967
  %2097 = vmatprep.mubr.bf16.mxu0 %v1666
  %2098 = vmatmul.mubr.bf16.gmra.mrb[0].mxu0 %v1665
  %v2099 = vpop.f32.mrb[0].mxu0
  %v2100 = vadd.f32 %v1738, %v2099
  %v2101 = vpop.f32.mrb[0].mxu0
  %v2102 = vadd.f32 %v1742, %v2101
  %v2103 = vpop.f32.mrb[0].mxu0
  %v2104 = vpop.f32.mrb[0].mxu0
  %2105 = vdwg.mxu0
  %2106 = vmatprep.subr.bf16.mxu0 %v1970
  %2107 = vmatpush1.bf16.msra.mxu0 %v1969
  %2108 = vmatprep.subr.bf16.mxu0 %v1972
  %2109 = vmatpush1.bf16.msra.mxu0 %v1971
  %2110 = vmatprep.subr.bf16.mxu0 %v1974
  %2111 = vmatpush1.bf16.msra.mxu0 %v1973
  %2112 = vmatprep.subr.bf16.mxu0 %v1976
  %2113 = vmatpush1.bf16.msra.mxu0 %v1975
  %2114 = vmatprep.subr.bf16.mxu0 %v1978
  %2115 = vmatpush1.bf16.msra.mxu0 %v1977
  %2116 = vmatprep.subr.bf16.mxu0 %v1980
  %2117 = vmatpush1.bf16.msra.mxu0 %v1979
  %2118 = vmatprep.subr.bf16.mxu0 %v1982
  %2119 = vmatpush1.bf16.msra.mxu0 %v1981
  %2120 = vmatprep.subr.bf16.mxu0 %v1984
  %2121 = vmatpush1.bf16.msra.mxu0 %v1983
  %2122 = vmatprep.subr.bf16.mxu0 %v1986
  %2123 = vmatpush1.bf16.msra.mxu0 %v1985
  %2124 = vmatprep.subr.bf16.mxu0 %v1988
  %2125 = vmatpush1.bf16.msra.mxu0 %v1987
  %2126 = vmatprep.subr.bf16.mxu0 %v1990
  %2127 = vmatpush1.bf16.msra.mxu0 %v1989
  %2128 = vmatprep.subr.bf16.mxu0 %v1992
  %2129 = vmatpush1.bf16.msra.mxu0 %v1991
  %2130 = vmatprep.subr.bf16.mxu0 %v1994
  %2131 = vmatpush1.bf16.msra.mxu0 %v1993
  %2132 = vmatprep.subr.bf16.mxu0 %v1996
  %2133 = vmatpush1.bf16.msra.mxu0 %v1995
  %2134 = vmatprep.subr.bf16.mxu0 %v1998
  %2135 = vmatpush1.bf16.msra.mxu0 %v1997
  %2136 = vmatprep.subr.bf16.mxu0 %v2000
  %2137 = vmatpush1.bf16.msra.mxu0 %v1999
  %2138 = vmatprep.mubr.bf16.mxu0 %v1668
  %2139 = vmatmul.mubr.bf16.gmra.mrb[0].mxu0 %v1667
  %v2140 = vpop.f32.mrb[0].mxu0
  %v2141 = vadd.f32 %v2100, %v2140
  %v2142 = vpop.f32.mrb[0].mxu0
  %v2143 = vadd.f32 %v2102, %v2142
  %v2144 = vpop.f32.mrb[0].mxu0
  %v2145 = vpop.f32.mrb[0].mxu0
  %2146 = vdwg.mxu0
  %v2147 = vmax.f32 %v2141, 0.0
  %v2148 = vmax.f32 %v2143, 0.0
  %v2149 = vld [vmem:[%s7] sm:$0x3]
  %v2151 = vlaneseq
  %v2152 = vshrl.u32 %v2151, 7
  %v2153 = vsub.s32 0, %v2152
  %v2154 = vrot.slane %v2149, %v2153
  %v2155 = vlaneseq
  %v2156 = vshrl.u32 %v2155, 7
  %v2157 = vsub.s32 1, %v2156
  %v2158 = vrot.slane %v2149, %v2157
  %v2161 = vmul.f32 %v2147, %v2154
  %v2162 = vmul.f32 %v2148, %v2158
  %v2163 = vld [vmem:[%s8] sm:$0x3]
  %v2165 = vlaneseq
  %v2166 = vshrl.u32 %v2165, 7
  %v2167 = vsub.s32 0, %v2166
  %v2168 = vrot.slane %v2163, %v2167
  %v2169 = vlaneseq
  %v2170 = vshrl.u32 %v2169, 7
  %v2171 = vsub.s32 1, %v2170
  %v2172 = vrot.slane %v2163, %v2171
  %v2175 = vadd.f32 %v2161, %v2168
  %v2176 = vadd.f32 %v2162, %v2172
  %v2177 = vpack.c.bf16 %v2175, %v2175
  %v2178 = vpack.c.bf16 %v2176, %v2176
  %v2179 = vld [vmem:[%s9] sm:$0xf]
  %v2180 = vld [vmem:[%s9 + $0x4] sm:$0xf]
  %v2181 = vld [vmem:[%s9 + $0x8] sm:$0xf]
  %v2182 = vld [vmem:[%s9 + $0xc] sm:$0xf]
  %v2183 = vld [vmem:[%s9 + $0x10] sm:$0xf]
  %v2184 = vld [vmem:[%s9 + $0x14] sm:$0xf]
  %v2185 = vld [vmem:[%s9 + $0x18] sm:$0xf]
  %v2186 = vld [vmem:[%s9 + $0x1c] sm:$0xf]
  %v2187 = vld [vmem:[%s9 + $0x20] sm:$0xf]
  %v2188 = vld [vmem:[%s9 + $0x24] sm:$0xf]
  %v2189 = vld [vmem:[%s9 + $0x28] sm:$0xf]
  %v2190 = vld [vmem:[%s9 + $0x2c] sm:$0xf]
  %v2191 = vld [vmem:[%s9 + $0x30] sm:$0xf]
  %v2192 = vld [vmem:[%s9 + $0x34] sm:$0xf]
  %v2193 = vld [vmem:[%s9 + $0x38] sm:$0xf]
  %v2194 = vld [vmem:[%s9 + $0x3c] sm:$0xf]
  %v2195 = vld [vmem:[%s9 + $0x40] sm:$0xf]
  %v2196 = vld [vmem:[%s9 + $0x44] sm:$0xf]
  %v2197 = vld [vmem:[%s9 + $0x48] sm:$0xf]
  %v2198 = vld [vmem:[%s9 + $0x4c] sm:$0xf]
  %v2199 = vld [vmem:[%s9 + $0x50] sm:$0xf]
  %v2200 = vld [vmem:[%s9 + $0x54] sm:$0xf]
  %v2201 = vld [vmem:[%s9 + $0x58] sm:$0xf]
  %v2202 = vld [vmem:[%s9 + $0x5c] sm:$0xf]
  %v2203 = vld [vmem:[%s9 + $0x60] sm:$0xf]
  %v2204 = vld [vmem:[%s9 + $0x64] sm:$0xf]
  %v2205 = vld [vmem:[%s9 + $0x68] sm:$0xf]
  %v2206 = vld [vmem:[%s9 + $0x6c] sm:$0xf]
  %v2207 = vld [vmem:[%s9 + $0x70] sm:$0xf]
  %v2208 = vld [vmem:[%s9 + $0x74] sm:$0xf]
  %v2209 = vld [vmem:[%s9 + $0x78] sm:$0xf]
  %v2210 = vld [vmem:[%s9 + $0x7c] sm:$0xf]
  %v2211 = vld [vmem:[%s10] sm:$0x1]
  %v2213 = vlaneseq
  %v2214 = vshrl.u32 %v2213, 7
  %v2215 = vsub.s32 0, %v2214
  %v2216 = vrot.slane %v2211, %v2215
  %v2250 = vunpack.c.l.b16 %v2179
  %v2251 = vunpack.c.l.b16 %v2180
  %v2252 = vunpack.c.l.b16 %v2181
  %v2253 = vunpack.c.l.b16 %v2182
  %v2254 = vunpack.c.l.b16 %v2183
  %v2255 = vunpack.c.l.b16 %v2184
  %v2256 = vunpack.c.l.b16 %v2185
  %v2257 = vunpack.c.l.b16 %v2186
  %v2258 = vunpack.c.l.b16 %v2187
  %v2259 = vunpack.c.l.b16 %v2188
  %v2260 = vunpack.c.l.b16 %v2189
  %v2261 = vunpack.c.l.b16 %v2190
  %v2262 = vunpack.c.l.b16 %v2191
  %v2263 = vunpack.c.l.b16 %v2192
  %v2264 = vunpack.c.l.b16 %v2193
  %v2265 = vunpack.c.l.b16 %v2194
  %v2266 = vunpack.c.l.b16 %v2195
  %v2267 = vunpack.c.l.b16 %v2196
  %v2268 = vunpack.c.l.b16 %v2197
  %v2269 = vunpack.c.l.b16 %v2198
  %v2270 = vunpack.c.l.b16 %v2199
  %v2271 = vunpack.c.l.b16 %v2200
  %v2272 = vunpack.c.l.b16 %v2201
  %v2273 = vunpack.c.l.b16 %v2202
  %v2274 = vunpack.c.l.b16 %v2203
  %v2275 = vunpack.c.l.b16 %v2204
  %v2276 = vunpack.c.l.b16 %v2205
  %v2277 = vunpack.c.l.b16 %v2206
  %v2278 = vunpack.c.l.b16 %v2207
  %v2279 = vunpack.c.l.b16 %v2208
  %v2280 = vunpack.c.l.b16 %v2209
  %v2281 = vunpack.c.l.b16 %v2210
  %v2282 = vpack.c.b16 %v2251, %v2250
  %v2283 = vpack.c.b16 %v2253, %v2252
  %v2284 = vpack.c.b16 %v2255, %v2254
  %v2285 = vpack.c.b16 %v2257, %v2256
  %v2286 = vpack.c.b16 %v2259, %v2258
  %v2287 = vpack.c.b16 %v2261, %v2260
  %v2288 = vpack.c.b16 %v2263, %v2262
  %v2289 = vpack.c.b16 %v2265, %v2264
  %v2290 = vpack.c.b16 %v2267, %v2266
  %v2291 = vpack.c.b16 %v2269, %v2268
  %v2292 = vpack.c.b16 %v2271, %v2270
  %v2293 = vpack.c.b16 %v2273, %v2272
  %v2294 = vpack.c.b16 %v2275, %v2274
  %v2295 = vpack.c.b16 %v2277, %v2276
  %v2296 = vpack.c.b16 %v2279, %v2278
  %v2297 = vpack.c.b16 %v2281, %v2280
  %2314 = vmatprep.subr.bf16.mxu0 0
  %2315 = vmatpush1.bf16.msra.mxu0 %v2282
  %2316 = vmatprep.subr.bf16.mxu0 0
  %2317 = vmatpush1.bf16.msra.mxu0 %v2283
  %2318 = vmatprep.subr.bf16.mxu0 0
  %2319 = vmatpush1.bf16.msra.mxu0 %v2284
  %2320 = vmatprep.subr.bf16.mxu0 0
  %2321 = vmatpush1.bf16.msra.mxu0 %v2285
  %2322 = vmatprep.subr.bf16.mxu0 0
  %2323 = vmatpush1.bf16.msra.mxu0 %v2286
  %2324 = vmatprep.subr.bf16.mxu0 0
  %2325 = vmatpush1.bf16.msra.mxu0 %v2287
  %2326 = vmatprep.subr.bf16.mxu0 0
  %2327 = vmatpush1.bf16.msra.mxu0 %v2288
  %2328 = vmatprep.subr.bf16.mxu0 0
  %2329 = vmatpush1.bf16.msra.mxu0 %v2289
  %2330 = vmatprep.subr.bf16.mxu0 0
  %2331 = vmatpush1.bf16.msra.mxu0 %v2290
  %2332 = vmatprep.subr.bf16.mxu0 0
  %2333 = vmatpush1.bf16.msra.mxu0 %v2291
  %2334 = vmatprep.subr.bf16.mxu0 0
  %2335 = vmatpush1.bf16.msra.mxu0 %v2292
  %2336 = vmatprep.subr.bf16.mxu0 0
  %2337 = vmatpush1.bf16.msra.mxu0 %v2293
  %2338 = vmatprep.subr.bf16.mxu0 0
  %2339 = vmatpush1.bf16.msra.mxu0 %v2294
  %2340 = vmatprep.subr.bf16.mxu0 0
  %2341 = vmatpush1.bf16.msra.mxu0 %v2295
  %2342 = vmatprep.subr.bf16.mxu0 0
  %2343 = vmatpush1.bf16.msra.mxu0 %v2296
  %2344 = vmatprep.subr.bf16.mxu0 0
  %2345 = vmatpush1.bf16.msra.mxu0 %v2297
  %2346 = vmatprep.mubr.bf16.mxu0 %v2178
  %2347 = vmatmul.mubr.bf16.gmra.mrb[0].mxu0 %v2177
  %v2348 = vpop.f32.mrb[0].mxu0
  %v2349 = vadd.f32 %v2216, %v2348
  %v2350 = vpop.f32.mrb[0].mxu0
  %v2351 = vpop.f32.mrb[0].mxu0
  %v2352 = vpop.f32.mrb[0].mxu0
  %2353 = vdwg.mxu0
  %v2354 = vmax.f32 %v2349, 0.0
  %v2355 = vld [vmem:[%s11] sm:$0x1]
  %v2357 = vlaneseq
  %v2358 = vshrl.u32 %v2357, 7
  %v2359 = vsub.s32 0, %v2358
  %v2360 = vrot.slane %v2355, %v2359
  %v2362 = vmul.f32 %v2354, %v2360
  %v2363 = vld [vmem:[%s12] sm:$0x1]
  %v2365 = vlaneseq
  %v2366 = vshrl.u32 %v2365, 7
  %v2367 = vsub.s32 0, %v2366
  %v2368 = vrot.slane %v2363, %v2367
  %v2370 = vadd.f32 %v2362, %v2368
  %v2371 = vpack.c.bf16 %v2370, %v2370
  %v2372 = vld [vmem:[%s13] sm:$0xf]
  %v2373 = vld [vmem:[%s13 + $0x4] sm:$0xf]
  %v2374 = vld [vmem:[%s13 + $0x8] sm:$0xf]
  %v2375 = vld [vmem:[%s13 + $0xc] sm:$0xf]
  %v2376 = vld [vmem:[%s13 + $0x10] sm:$0xf]
  %v2377 = vld [vmem:[%s13 + $0x14] sm:$0xf]
  %v2378 = vld [vmem:[%s13 + $0x18] sm:$0xf]
  %v2379 = vld [vmem:[%s13 + $0x1c] sm:$0xf]
  %v2380 = vld [vmem:[%s13 + $0x20] sm:$0xf]
  %v2381 = vld [vmem:[%s13 + $0x24] sm:$0xf]
  %v2382 = vld [vmem:[%s13 + $0x28] sm:$0xf]
  %v2383 = vld [vmem:[%s13 + $0x2c] sm:$0xf]
  %v2384 = vld [vmem:[%s13 + $0x30] sm:$0xf]
  %v2385 = vld [vmem:[%s13 + $0x34] sm:$0xf]
  %v2386 = vld [vmem:[%s13 + $0x38] sm:$0xf]
  %v2387 = vld [vmem:[%s13 + $0x3c] sm:$0xf]
  %v2388 = vld [vmem:[%s14] sm:$0x1]
  %v2390 = vlaneseq
  %v2391 = vshrl.u32 %v2390, 7
  %v2392 = vsub.s32 0, %v2391
  %v2393 = vrot.slane %v2388, %v2392
  %v2411 = vunpack.c.l.b16 %v2372
  %v2412 = vunpack.c.l.b16 %v2373
  %v2413 = vunpack.c.l.b16 %v2374
  %v2414 = vunpack.c.l.b16 %v2375
  %v2415 = vunpack.c.l.b16 %v2376
  %v2416 = vunpack.c.l.b16 %v2377
  %v2417 = vunpack.c.l.b16 %v2378
  %v2418 = vunpack.c.l.b16 %v2379
  %v2419 = vunpack.c.l.b16 %v2380
  %v2420 = vunpack.c.l.b16 %v2381
  %v2421 = vunpack.c.l.b16 %v2382
  %v2422 = vunpack.c.l.b16 %v2383
  %v2423 = vunpack.c.l.b16 %v2384
  %v2424 = vunpack.c.l.b16 %v2385
  %v2425 = vunpack.c.l.b16 %v2386
  %v2426 = vunpack.c.l.b16 %v2387
  %v2427 = vpack.c.b16 %v2412, %v2411
  %v2428 = vpack.c.b16 %v2414, %v2413
  %v2429 = vpack.c.b16 %v2416, %v2415
  %v2430 = vpack.c.b16 %v2418, %v2417
  %v2431 = vpack.c.b16 %v2420, %v2419
  %v2432 = vpack.c.b16 %v2422, %v2421
  %v2433 = vpack.c.b16 %v2424, %v2423
  %v2434 = vpack.c.b16 %v2426, %v2425
  %2443 = vmatprep.subr.bf16.mxu0 0
  %2444 = vmatpush1.bf16.msra.mxu0 %v2427
  %2445 = vmatprep.subr.bf16.mxu0 0
  %2446 = vmatpush1.bf16.msra.mxu0 %v2428
  %2447 = vmatprep.subr.bf16.mxu0 0
  %2448 = vmatpush1.bf16.msra.mxu0 %v2429
  %2449 = vmatprep.subr.bf16.mxu0 0
  %2450 = vmatpush1.bf16.msra.mxu0 %v2430
  %2451 = vmatprep.subr.bf16.mxu0 0
  %2452 = vmatpush1.bf16.msra.mxu0 %v2431
  %2453 = vmatprep.subr.bf16.mxu0 0
  %2454 = vmatpush1.bf16.msra.mxu0 %v2432
  %2455 = vmatprep.subr.bf16.mxu0 0
  %2456 = vmatpush1.bf16.msra.mxu0 %v2433
  %2457 = vmatprep.subr.bf16.mxu0 0
  %2458 = vmatpush1.bf16.msra.mxu0 %v2434
  %2459 = vmatprep.subr.bf16.mxu0 0
  %2460 = vmatpush1.bf16.msra.mxu0 0
  %2461 = vmatprep.subr.bf16.mxu0 0
  %2462 = vmatpush1.bf16.msra.mxu0 0
  %2463 = vmatprep.subr.bf16.mxu0 0
  %2464 = vmatpush1.bf16.msra.mxu0 0
  %2465 = vmatprep.subr.bf16.mxu0 0
  %2466 = vmatpush1.bf16.msra.mxu0 0
  %2467 = vmatprep.subr.bf16.mxu0 0
  %2468 = vmatpush1.bf16.msra.mxu0 0
  %2469 = vmatprep.subr.bf16.mxu0 0
  %2470 = vmatpush1.bf16.msra.mxu0 0
  %2471 = vmatprep.subr.bf16.mxu0 0
  %2472 = vmatpush1.bf16.msra.mxu0 0
  %2473 = vmatprep.subr.bf16.mxu0 0
  %2474 = vmatpush1.bf16.msra.mxu0 0
  %2475 = vmatprep.mubr.bf16.mxu0 0
  %2476 = vmatmul.mubr.bf16.gmra.mrb[0].mxu0 %v2371
  %v2477 = vpop.f32.mrb[0].mxu0
  %v2478 = vadd.f32 %v2393, %v2477
  %v2479 = vpop.f32.mrb[0].mxu0
  %v2480 = vpop.f32.mrb[0].mxu0
  %v2481 = vpop.f32.mrb[0].mxu0
  %2482 = vdwg.mxu0
  %2483 = vmax.xlane.f32.xlu0 %v2478
  %v2484 = vpop.xlane.xlu0 %2483
  %v2485 = vsub.f32 %v2478, %v2484
  %v2486 = vmul.f32 %v2485, 1.442695
  %v2487 = vpow.pop %v2486
  %2488 = vadd.xlane.f32.xlu0 %v2487
  %v2489 = vpop.xlane.xlu0 %2488
  %v2490 = vlog2.pop %v2489
  %v2491 = vmul.f32 %v2490, 0.6931472
  %v2492 = vsub.f32 %v2485, %v2491
  %2493 = vst [vmem:[%s15] sm:$0xff] %v2492
  // Predicated region
  $region62: #{digit_recognizer_mlp_forward.1} parent=0 // pred_check
    _
  $region63: #{digit_recognizer_mlp_forward.1} parent=0 // pred_check_branch
    %2495 = sbr.rel (0) target = $region65
  $region64: #{digit_recognizer_mlp_forward.1} parent=0 // pred_region
    _
  $region65: #{digit_recognizer_mlp_forward.1} parent=0 // pred_fallthru
    _
  // Predicated region
  $region66: #{digit_recognizer_mlp_forward.1} parent=0 // pred_check
    _
  $region67: #{digit_recognizer_mlp_forward.1} parent=0 // pred_check_branch
    %2497 = sbr.rel (0) target = $region69
  $region68: #{digit_recognizer_mlp_forward.1} parent=0 // pred_region
    _
  $region69: #{digit_recognizer_mlp_forward.1} parent=0 // pred_fallthru
    _

</llo_original>
